<compile_context>
chip_gen: v7x
topology: tpu7x:2x2x1
jax: 0.10.0
libtpu: 0.0.40
codegen_flags: <defaults>
</compile_context>

<pallas_src>
import jax
import jax.numpy as jnp
from jax import lax
from jax.experimental import pallas as pl
from jax.experimental.pallas import tpu as pltpu


def _hardtanh(x):
    return jnp.clip(x, -1.0, 1.0)


# ------------------------------- kernel -----------------------------------

def event_comp_kernel(
    e1_ref, e2_ref,            # (tE, D) endpoint-embedding tiles (input dtype)
    w1p_ref, b1p_ref,          # arg_l1 packed: (2D, 2H) bf16, (1, 2H)  f32
    w2p_ref, b2p_ref,          # arg_l2 packed: (2H, H)  bf16, (1, H)   f32
    we1_ref, be1_ref,          # event_l1:      (H, H/2) bf16, (1, H/2) f32
    we2_ref, be2_ref,          # event_l2:      (H/2,H/4) bf16,(1, H/4) f32
    we3r_ref, be3_ref,         # event_l3:      (1, H/4) bf16, (1, 1)   f32
    logits_ref,                # out: (1, tE) f32, lane-dense row
):
    f32, bf16 = jnp.float32, jnp.bfloat16

    # In-kernel bf16 downcast (inputs stream from HBM untouched) and a cheap
    # lane-concat of the two endpoints: x = [e1 | e2]  -> (tE, 2D).
    x = jnp.concatenate(
        [e1_ref[...].astype(bf16), e2_ref[...].astype(bf16)], axis=-1)

    # arg_l1 / arg_l2 as single K/N-packed matmuls against block-diagonal
    # weights (one MXU pass per layer for both endpoints).  Bias + hardtanh
    # stay in f32 (v5e VPU has no bf16 arithmetic; values then recast to bf16
    # only as matmul operands).
    h1 = _hardtanh(jnp.dot(x, w1p_ref[...], preferred_element_type=f32)
                   + b1p_ref[...])                       # (tE, 2H) = [h1a|h1b]
    h2 = _hardtanh(jnp.dot(h1.astype(bf16), w2p_ref[...],
                           preferred_element_type=f32)
                   + b2p_ref[...])                       # (tE, H)  = [h2a|h2b]

    # h2 is already cat((e1_arg_h2, e2_arg_h2), dim=1): event_l1 is one dot
    # against the original We1 — no reshape, no split, no extra matmul.
    ev1 = _hardtanh(jnp.dot(h2.astype(bf16), we1_ref[...],
                            preferred_element_type=f32) + be1_ref[...])
    ev2 = _hardtanh(jnp.dot(ev1.astype(bf16), we2_ref[...],
                            preferred_element_type=f32) + be2_ref[...])

    # event_l3 as a contraction over ev2's last dim: (1,H/4)·(tE,H/4)^T without
    # an explicit transpose (no XLU vxpose) -> lane-dense (1, tE) logits row.
    logits = lax.dot_general(we3r_ref[...], ev2.astype(bf16),
                             (((1,), (1,)), ((), ())),
                             preferred_element_type=f32) + be3_ref[...]
    logits_ref[...] = logits


# ------------------------------- wrapper -----------------------------------

def _blockdiag2(w):
    """[[W, 0], [0, W]] — packs both endpoints into one K/N-wide matmul."""
    z = jnp.zeros_like(w)
    top = jnp.concatenate([w, z], axis=1)
    bot = jnp.concatenate([z, w], axis=1)
    return jnp.concatenate([top, bot], axis=0)


def _pick_tile_e(E, max_tile=2048):
    """Largest 128-multiple tile (<= max_tile) that keeps >= 2 grid steps
    (so both v7x TensorCores get work) and <= ~3% padded-row waste."""
    e128 = -(-E // 128) * 128
    max_m = max(1, min(max_tile // 128, e128 // 256))
    budget = max(128, (3 * E) // 100)
    best = 128
    for m in range(1, max_m + 1):
        t = m * 128
        pad = -(-E // t) * t - E
        if pad <= budget:
            best = t
    return best


def event_comp_pallas(e1, e2, params, *, tile_e=None, max_tile_e=2048):
    """Composed-event-pair MLP (BertEventComp.compose_event_pair hot path).

    e1, e2: (E, in_dim) gathered endpoint embeddings (f32 or bf16).
    Returns (logits, scores), each (E,), f32.
    """
    E, D = e1.shape
    (w1, b1, w2, b2, we1, be1, we2, be2, we3, be3) = params
    H, H2, H4 = w1.shape[1], w2.shape[1], we2.shape[1]

    if tile_e is None:
        tile_e = _pick_tile_e(E, max_tile=max_tile_e)
    assert tile_e % 128 == 0, "tile_e must be a multiple of 128"
    n_tiles = pl.cdiv(E, tile_e)
    e_pad = n_tiles * tile_e
    if e_pad != E:
        # Fallback only (one extra HBM pass over the inputs): callers should
        # pad the tiny edge-index arrays *before* the gather (see __main__) so
        # the gathered embeddings arrive tile-aligned and this never fires.
        e1 = jnp.pad(e1, ((0, e_pad - E), (0, 0)))
        e2 = jnp.pad(e2, ((0, e_pad - E), (0, 0)))

    bf16 = jnp.bfloat16
    # Block-diagonal packing for the per-argument layers; tiny one-time prep.
    w1p = _blockdiag2(w1).astype(bf16)                 # (2D, 2H)
    b1p = jnp.concatenate([b1, b1], axis=1)            # (1, 2H)  f32
    w2p = _blockdiag2(w2).astype(bf16)                 # (2H, H)
    b2p = jnp.concatenate([b2, b2], axis=1)            # (1, H)   f32
    w_args = (w1p, b1p, w2p, b2p,
              we1.astype(bf16), be1,
              we2.astype(bf16), be2,
              we3.reshape(1, H4).astype(bf16), be3)

    # Weights/biases: constant block index -> fetched once, VMEM-resident
    # across the whole grid.
    def _const(a):
        return pl.BlockSpec(a.shape, lambda i: (0, 0))

    in_specs = [pl.BlockSpec((tile_e, D), lambda i: (i, 0)),
                pl.BlockSpec((tile_e, D), lambda i: (i, 0))]
    in_specs += [_const(a) for a in w_args]
    out_specs = pl.BlockSpec((1, tile_e), lambda i: (0, i))

    # Actual MXU work per edge (block-diagonal zeros included).
    flops_per_row = 2 * ((2 * D) * (2 * H) + (2 * H) * (2 * H2)
                         + (2 * H2) * H2 + H2 * H4 + H4)
    cost = pl.CostEstimate(
        flops=int(e_pad * flops_per_row),
        transcendentals=0,
        bytes_accessed=int(2 * e_pad * D * e1.dtype.itemsize + e_pad * 4
                           + sum(int(a.size) * a.dtype.itemsize for a in w_args)),
    )

    logits_row = pl.pallas_call(
        event_comp_kernel,
        out_shape=jax.ShapeDtypeStruct((1, e_pad), jnp.float32),
        grid_spec=pltpu.PrefetchScalarGridSpec(
            num_scalar_prefetch=0,
            grid=(n_tiles,),
            in_specs=in_specs,
            out_specs=out_specs,
        ),
        compiler_params=pltpu.CompilerParams(
            dimension_semantics=("parallel",),   # megacore split on v7x
        ),
        cost_estimate=cost,
    )(e1, e2, *w_args)

    logits = logits_row[0, :E]
    # Sigmoid is a trivially-fused XLA elementwise op; keeping it outside lets
    # the kernel write a single lane-dense output row.
    return logits, jax.nn.sigmoid(logits)


# ----------------------------- parameters ---------------------------------

def xavier_uniform(key, fan_in, fan_out, gain):
    bound = gain * jnp.sqrt(6.0 / (fan_in + fan_out))
    return jax.random.uniform(
        key, (fan_in, fan_out), dtype=jnp.float32, minval=-bound, maxval=bound)


def linear_bias(key, fan_in, fan_out):
    bound = 1.0 / jnp.sqrt(float(fan_in))
    return jax.random.uniform(
        key, (1, fan_out), dtype=jnp.float32, minval=-bound, maxval=bound)


def make_params(key, in_dim, h_dim):
    gain_tanh = 5.0 / 3.0
    gain_sigmoid = 1.0
    ks = jax.random.split(key, 10)
    # Weights stored (in, out) == transpose of nn.Linear.weight
    w1 = xavier_uniform(ks[0], in_dim, h_dim, gain_tanh)
    b1 = linear_bias(ks[1], in_dim, h_dim)
    w2 = xavier_uniform(ks[2], h_dim, h_dim // 2, gain_tanh)
    b2 = linear_bias(ks[3], h_dim, h_dim // 2)
    we1 = xavier_uniform(ks[4], h_dim, h_dim // 2, gain_tanh)
    be1 = linear_bias(ks[5], h_dim, h_dim // 2)
    we2 = xavier_uniform(ks[6], h_dim // 2, h_dim // 4, gain_tanh)
    be2 = linear_bias(ks[7], h_dim // 2, h_dim // 4)
    we3 = xavier_uniform(ks[8], h_dim // 4, 1, gain_sigmoid)
    be3 = linear_bias(ks[9], h_dim // 4, 1)
    return (w1, b1, w2, b2, we1, be1, we2, be2, we3, be3)


# ------------------------------ references --------------------------------

def _reference(e1, e2, params, matmul_dtype):
    (w1, b1, w2, b2, we1, be1, we2, be2, we3, be3) = params
    f32 = jnp.float32

    def mm(a, b):
        return jnp.dot(a.astype(matmul_dtype), b.astype(matmul_dtype),
                       preferred_element_type=f32)

    h1a = _hardtanh(mm(e1, w1) + b1)
    h1b = _hardtanh(mm(e2, w1) + b1)
    h2a = _hardtanh(mm(h1a, w2) + b2)
    h2b = _hardtanh(mm(h1b, w2) + b2)
    ev1 = _hardtanh(mm(jnp.concatenate([h2a, h2b], axis=1), we1) + be1)
    ev2 = _hardtanh(mm(ev1, we2) + be2)
    logits = (mm(ev2, we3) + be3)[:, 0]
    return logits, jax.nn.sigmoid(logits)


def reference_matched_precision(e1, e2, params):
    # Mirrors the kernel's bf16-operand / f32-accumulate matmuls.
    return _reference(e1, e2, params, jnp.bfloat16)


def reference_f32(e1, e2, params):
    return _reference(e1, e2, params, jnp.float32)


def bce_with_logits_pos_weight(logits, ys, pos_weight):
    # matches torch.nn.BCEWithLogitsLoss(pos_weight=pos_weight), mean reduction
    log_sig = jax.nn.log_sigmoid(logits)
    log_sig_neg = jax.nn.log_sigmoid(-logits)
    loss = -(pos_weight * ys * log_sig + (1.0 - ys) * log_sig_neg)
    return jnp.mean(loss)


if __name__ == "__main__":
    key = jax.random.PRNGKey(0)
    k_emb, k_param, k_edge, k_y = jax.random.split(key, 4)

    # Small shapes consistent with the module: BERT-tiny hidden = in_dim.
    N = 32          # number of graph nodes
    in_dim = 128    # BERT embedding dim (google/bert_uncased_L-2_H-128_A-2)
    h_dim = 64      # hidden dim of the composition MLP
    E = 300         # number of target edges (not tile-aligned)

    # Node embeddings (stand-in for BERTNarrativeGraph output).
    emb = jax.random.normal(k_emb, (N, in_dim), dtype=jnp.float32)

    # Target-edge tensor te: rows = (e1_idx, rel, e2_idx, y) as in the module.
    e1_idx = jax.random.randint(k_edge, (E,), 0, N)
    e2_idx = jax.random.randint(jax.random.fold_in(k_edge, 1), (E,), 0, N)
    ys = jax.random.randint(k_y, (E,), 0, 2).astype(jnp.float32)

    params = make_params(k_param, in_dim, h_dim)

    # Production-style glue: pad the TINY index vectors before the gather so
    # the gathered (E, D) embeddings come out tile-aligned -> the kernel
    # streams them straight from HBM with no extra stack/cast/pad copy.
    tile_e = _pick_tile_e(E)
    e_pad = pl.cdiv(E, tile_e) * tile_e
    e1_idx_p = jnp.pad(e1_idx, (0, e_pad - E))
    e2_idx_p = jnp.pad(e2_idx, (0, e_pad - E))
    # TODO(synk): fuse this gather into the kernel (scalar-prefetched indices
    # + VMEM-resident node table) to drop this HBM round trip entirely.
    e1 = emb[e1_idx_p]
    e2 = emb[e2_idx_p]

    logits_all, scores_all = event_comp_pallas(e1, e2, params, tile_e=tile_e)
    jax.block_until_ready((logits_all, scores_all))
    logits, scores = logits_all[:E], scores_all[:E]

    # Correctness: tight check against a reference with matching precision.
    ref_logits, ref_scores = reference_matched_precision(e1, e2, params)
    assert jnp.allclose(logits, ref_logits[:E], atol=2e-3, rtol=2e-3)
    assert jnp.allclose(scores, ref_scores[:E], atol=2e-3, rtol=2e-3)

    # Loose sanity check against the pure-f32 semantics of the module.
    _, ref32_scores = reference_f32(e1, e2, params)
    assert jnp.allclose(scores, ref32_scores[:E], atol=0.1)

    # Loss-mode glue (plain JAX), matching BCEWithLogitsLoss(pos_weight=n_negs).
    n_negs = 10.0
    _ = bce_with_logits_pos_weight(logits, ys, n_negs)

    print("KERNEL_OK")
</pallas_src>

<mosaic_0001>
module attributes {stable_mosaic.version = 11 : i64} {
  func.func @event_comp_kernel(%arg0: i32, %arg1: memref<128x128xf32, #tpu.memory_space<vmem>>, %arg2: memref<128x128xf32, #tpu.memory_space<vmem>>, %arg3: memref<256x128xbf16, #tpu.memory_space<vmem>>, %arg4: memref<1x128xf32, #tpu.memory_space<vmem>>, %arg5: memref<128x64xbf16, #tpu.memory_space<vmem>>, %arg6: memref<1x64xf32, #tpu.memory_space<vmem>>, %arg7: memref<64x32xbf16, #tpu.memory_space<vmem>>, %arg8: memref<1x32xf32, #tpu.memory_space<vmem>>, %arg9: memref<32x16xbf16, #tpu.memory_space<vmem>>, %arg10: memref<1x16xf32, #tpu.memory_space<vmem>>, %arg11: memref<1x16xbf16, #tpu.memory_space<vmem>>, %arg12: memref<1x1xf32, #tpu.memory_space<vmem>>, %arg13: memref<1x128xf32, #tpu.memory_space<vmem>>) attributes {dimension_semantics = [#tpu.dimension_semantics<parallel>], iteration_bounds = array<i64: 3>, scalar_prefetch = 0 : i64, scratch_operands = 0 : i64, tpu.core_type = #tpu.core_type<tc>, window_params = [{transform_indices = @transform_0, window_bounds = array<i64: 128, 128>}, {transform_indices = @transform_1, window_bounds = array<i64: 128, 128>}, {pipeline_mode = #tpu.pipeline_mode<synchronous>, transform_indices = @transform_2, window_bounds = array<i64: 256, 128>}, {pipeline_mode = #tpu.pipeline_mode<synchronous>, transform_indices = @transform_3, window_bounds = array<i64: 1, 128>}, {pipeline_mode = #tpu.pipeline_mode<synchronous>, transform_indices = @transform_4, window_bounds = array<i64: 128, 64>}, {pipeline_mode = #tpu.pipeline_mode<synchronous>, transform_indices = @transform_5, window_bounds = array<i64: 1, 64>}, {pipeline_mode = #tpu.pipeline_mode<synchronous>, transform_indices = @transform_6, window_bounds = array<i64: 64, 32>}, {pipeline_mode = #tpu.pipeline_mode<synchronous>, transform_indices = @transform_7, window_bounds = array<i64: 1, 32>}, {pipeline_mode = #tpu.pipeline_mode<synchronous>, transform_indices = @transform_8, window_bounds = array<i64: 32, 16>}, {pipeline_mode = #tpu.pipeline_mode<synchronous>, transform_indices = @transform_9, window_bounds = array<i64: 1, 16>}, {pipeline_mode = #tpu.pipeline_mode<synchronous>, transform_indices = @transform_10, window_bounds = array<i64: 1, 16>}, {pipeline_mode = #tpu.pipeline_mode<synchronous>, transform_indices = @transform_11, window_bounds = array<i64: 1, 1>}, {transform_indices = @transform_12, window_bounds = array<i64: 1, 128>}]} {
    %c0 = arith.constant 0 : index
    %c0_0 = arith.constant 0 : index
    %0 = vector.load %arg1[%c0, %c0_0] : memref<128x128xf32, #tpu.memory_space<vmem>>, vector<128x128xf32>
    %1 = arith.truncf %0 : vector<128x128xf32> to vector<128x128xbf16>
    %c0_1 = arith.constant 0 : index
    %c0_2 = arith.constant 0 : index
    %2 = vector.load %arg2[%c0_1, %c0_2] : memref<128x128xf32, #tpu.memory_space<vmem>>, vector<128x128xf32>
    %3 = arith.truncf %2 : vector<128x128xf32> to vector<128x128xbf16>
    %4 = tpu.concatenate %1, %3 in 1 : vector<128x128xbf16>, vector<128x128xbf16> -> vector<128x256xbf16>
    %c0_3 = arith.constant 0 : index
    %c0_4 = arith.constant 0 : index
    %5 = vector.load %arg3[%c0_3, %c0_4] : memref<256x128xbf16, #tpu.memory_space<vmem>>, vector<256x128xbf16>
    %cst = arith.constant dense<0.000000e+00> : vector<128x128xf32>
    %6 = tpu.matmul %4, %5, %cst {dimension_numbers = #tpu.dot_dimension_numbers<[1], [0], [0], [1], [0, 0, 1, 1], [], []>} : vector<128x256xbf16>, vector<256x128xbf16>, vector<128x128xf32> -> vector<128x128xf32>
    %c0_5 = arith.constant 0 : index
    %c0_6 = arith.constant 0 : index
    %7 = vector.load %arg4[%c0_5, %c0_6] : memref<1x128xf32, #tpu.memory_space<vmem>>, vector<1x128xf32>
    %8 = vector.broadcast %7 : vector<1x128xf32> to vector<128x128xf32>
    %9 = arith.addf %6, %8 : vector<128x128xf32>
    %cst_7 = arith.constant -1.000000e+00 : f32
    %cst_8 = arith.constant 1.000000e+00 : f32
    %10 = vector.broadcast %cst_7 : f32 to vector<128x128xf32>
    %11 = arith.maximumf %10, %9 : vector<128x128xf32>
    %12 = vector.broadcast %cst_8 : f32 to vector<128x128xf32>
    %13 = arith.minimumf %12, %11 : vector<128x128xf32>
    %14 = arith.truncf %13 : vector<128x128xf32> to vector<128x128xbf16>
    %c0_9 = arith.constant 0 : index
    %c0_10 = arith.constant 0 : index
    %15 = vector.load %arg5[%c0_9, %c0_10] : memref<128x64xbf16, #tpu.memory_space<vmem>>, vector<128x64xbf16>
    %cst_11 = arith.constant dense<0.000000e+00> : vector<128x64xf32>
    %16 = tpu.matmul %14, %15, %cst_11 {dimension_numbers = #tpu.dot_dimension_numbers<[1], [0], [0], [1], [0, 0, 1, 1], [], []>} : vector<128x128xbf16>, vector<128x64xbf16>, vector<128x64xf32> -> vector<128x64xf32>
    %c0_12 = arith.constant 0 : index
    %c0_13 = arith.constant 0 : index
    %17 = vector.load %arg6[%c0_12, %c0_13] : memref<1x64xf32, #tpu.memory_space<vmem>>, vector<1x64xf32>
    %18 = vector.broadcast %17 : vector<1x64xf32> to vector<128x64xf32>
    %19 = arith.addf %16, %18 : vector<128x64xf32>
    %cst_14 = arith.constant -1.000000e+00 : f32
    %cst_15 = arith.constant 1.000000e+00 : f32
    %20 = vector.broadcast %cst_14 : f32 to vector<128x64xf32>
    %21 = arith.maximumf %20, %19 : vector<128x64xf32>
    %22 = vector.broadcast %cst_15 : f32 to vector<128x64xf32>
    %23 = arith.minimumf %22, %21 : vector<128x64xf32>
    %24 = arith.truncf %23 : vector<128x64xf32> to vector<128x64xbf16>
    %c0_16 = arith.constant 0 : index
    %c0_17 = arith.constant 0 : index
    %25 = vector.load %arg7[%c0_16, %c0_17] : memref<64x32xbf16, #tpu.memory_space<vmem>>, vector<64x32xbf16>
    %cst_18 = arith.constant dense<0.000000e+00> : vector<128x32xf32>
    %26 = tpu.matmul %24, %25, %cst_18 {dimension_numbers = #tpu.dot_dimension_numbers<[1], [0], [0], [1], [0, 0, 1, 1], [], []>} : vector<128x64xbf16>, vector<64x32xbf16>, vector<128x32xf32> -> vector<128x32xf32>
    %c0_19 = arith.constant 0 : index
    %c0_20 = arith.constant 0 : index
    %27 = vector.load %arg8[%c0_19, %c0_20] : memref<1x32xf32, #tpu.memory_space<vmem>>, vector<1x32xf32>
    %28 = vector.broadcast %27 : vector<1x32xf32> to vector<128x32xf32>
    %29 = arith.addf %26, %28 : vector<128x32xf32>
    %cst_21 = arith.constant -1.000000e+00 : f32
    %cst_22 = arith.constant 1.000000e+00 : f32
    %30 = vector.broadcast %cst_21 : f32 to vector<128x32xf32>
    %31 = arith.maximumf %30, %29 : vector<128x32xf32>
    %32 = vector.broadcast %cst_22 : f32 to vector<128x32xf32>
    %33 = arith.minimumf %32, %31 : vector<128x32xf32>
    %34 = arith.truncf %33 : vector<128x32xf32> to vector<128x32xbf16>
    %c0_23 = arith.constant 0 : index
    %c0_24 = arith.constant 0 : index
    %35 = vector.load %arg9[%c0_23, %c0_24] : memref<32x16xbf16, #tpu.memory_space<vmem>>, vector<32x16xbf16>
    %cst_25 = arith.constant dense<0.000000e+00> : vector<128x16xf32>
    %36 = tpu.matmul %34, %35, %cst_25 {dimension_numbers = #tpu.dot_dimension_numbers<[1], [0], [0], [1], [0, 0, 1, 1], [], []>} : vector<128x32xbf16>, vector<32x16xbf16>, vector<128x16xf32> -> vector<128x16xf32>
    %c0_26 = arith.constant 0 : index
    %c0_27 = arith.constant 0 : index
    %37 = vector.load %arg10[%c0_26, %c0_27] : memref<1x16xf32, #tpu.memory_space<vmem>>, vector<1x16xf32>
    %38 = vector.broadcast %37 : vector<1x16xf32> to vector<128x16xf32>
    %39 = arith.addf %36, %38 : vector<128x16xf32>
    %cst_28 = arith.constant -1.000000e+00 : f32
    %cst_29 = arith.constant 1.000000e+00 : f32
    %40 = vector.broadcast %cst_28 : f32 to vector<128x16xf32>
    %41 = arith.maximumf %40, %39 : vector<128x16xf32>
    %42 = vector.broadcast %cst_29 : f32 to vector<128x16xf32>
    %43 = arith.minimumf %42, %41 : vector<128x16xf32>
    %c0_30 = arith.constant 0 : index
    %c0_31 = arith.constant 0 : index
    %44 = vector.load %arg11[%c0_30, %c0_31] : memref<1x16xbf16, #tpu.memory_space<vmem>>, vector<1x16xbf16>
    %45 = arith.truncf %43 : vector<128x16xf32> to vector<128x16xbf16>
    %cst_32 = arith.constant dense<0.000000e+00> : vector<1x128xf32>
    %46 = tpu.matmul %44, %45, %cst_32 {dimension_numbers = #tpu.dot_dimension_numbers<[1], [1], [0], [0], [0, 0, 1, 0], [], []>} : vector<1x16xbf16>, vector<128x16xbf16>, vector<1x128xf32> -> vector<1x128xf32>
    %c0_33 = arith.constant 0 : index
    %c0_34 = arith.constant 0 : index
    %47 = vector.load %arg12[%c0_33, %c0_34] : memref<1x1xf32, #tpu.memory_space<vmem>>, vector<1x1xf32>
    %48 = vector.broadcast %47 : vector<1x1xf32> to vector<1x128xf32>
    %49 = arith.addf %46, %48 : vector<1x128xf32>
    %c0_35 = arith.constant 0 : index
    %c0_36 = arith.constant 0 : index
    %50 = vector.load %arg13[%c0_35, %c0_36] : memref<1x128xf32, #tpu.memory_space<vmem>>, vector<1x128xf32>
    tpu.vector_store %arg13[%c0_35, %c0_36], %49 {strides = array<i32>} : memref<1x128xf32, #tpu.memory_space<vmem>>, vector<1x128xf32>,
    return
  }
  func.func @transform_0(%arg0: i32) -> (i32, i32) {
    %c0_i32 = arith.constant 0 : i32
    %c0_i32_0 = arith.constant 0 : i32
    return %arg0, %c0_i32 : i32, i32
  }
  func.func @transform_1(%arg0: i32) -> (i32, i32) {
    %c0_i32 = arith.constant 0 : i32
    %c0_i32_0 = arith.constant 0 : i32
    return %arg0, %c0_i32 : i32, i32
  }
  func.func @transform_2(%arg0: i32) -> (i32, i32) {
    %c0_i32 = arith.constant 0 : i32
    %c0_i32_0 = arith.constant 0 : i32
    %c0_i32_1 = arith.constant 0 : i32
    return %c0_i32, %c0_i32_0 : i32, i32
  }
  func.func @transform_3(%arg0: i32) -> (i32, i32) {
    %c0_i32 = arith.constant 0 : i32
    %c0_i32_0 = arith.constant 0 : i32
    %c0_i32_1 = arith.constant 0 : i32
    return %c0_i32, %c0_i32_0 : i32, i32
  }
  func.func @transform_4(%arg0: i32) -> (i32, i32) {
    %c0_i32 = arith.constant 0 : i32
    %c0_i32_0 = arith.constant 0 : i32
    %c0_i32_1 = arith.constant 0 : i32
    return %c0_i32, %c0_i32_0 : i32, i32
  }
  func.func @transform_5(%arg0: i32) -> (i32, i32) {
    %c0_i32 = arith.constant 0 : i32
    %c0_i32_0 = arith.constant 0 : i32
    %c0_i32_1 = arith.constant 0 : i32
    return %c0_i32, %c0_i32_0 : i32, i32
  }
  func.func @transform_6(%arg0: i32) -> (i32, i32) {
    %c0_i32 = arith.constant 0 : i32
    %c0_i32_0 = arith.constant 0 : i32
    %c0_i32_1 = arith.constant 0 : i32
    return %c0_i32, %c0_i32_0 : i32, i32
  }
  func.func @transform_7(%arg0: i32) -> (i32, i32) {
    %c0_i32 = arith.constant 0 : i32
    %c0_i32_0 = arith.constant 0 : i32
    %c0_i32_1 = arith.constant 0 : i32
    return %c0_i32, %c0_i32_0 : i32, i32
  }
  func.func @transform_8(%arg0: i32) -> (i32, i32) {
    %c0_i32 = arith.constant 0 : i32
    %c0_i32_0 = arith.constant 0 : i32
    %c0_i32_1 = arith.constant 0 : i32
    return %c0_i32, %c0_i32_0 : i32, i32
  }
  func.func @transform_9(%arg0: i32) -> (i32, i32) {
    %c0_i32 = arith.constant 0 : i32
    %c0_i32_0 = arith.constant 0 : i32
    %c0_i32_1 = arith.constant 0 : i32
    return %c0_i32, %c0_i32_0 : i32, i32
  }
  func.func @transform_10(%arg0: i32) -> (i32, i32) {
    %c0_i32 = arith.constant 0 : i32
    %c0_i32_0 = arith.constant 0 : i32
    %c0_i32_1 = arith.constant 0 : i32
    return %c0_i32, %c0_i32_0 : i32, i32
  }
  func.func @transform_11(%arg0: i32) -> (i32, i32) {
    %c0_i32 = arith.constant 0 : i32
    %c0_i32_0 = arith.constant 0 : i32
    %c0_i32_1 = arith.constant 0 : i32
    return %c0_i32, %c0_i32_0 : i32, i32
  }
  func.func @transform_12(%arg0: i32) -> (i32, i32) {
    %c0_i32 = arith.constant 0 : i32
    %c0_i32_0 = arith.constant 0 : i32
    return %c0_i32, %arg0 : i32, i32
  }
}

</mosaic_0001>

<llo_original>
// kernel: tpu_custom_call.1
$region0: #{tpu_custom_call.1}
  #allocation0 [shape = 'u32[]', space=smem, size = 0x4, offset = 0x4, fixed_abs, tag = 'smem constant byte address 0x4 - core index']
  #allocation1 [shape = 'u32[144,128]{1,0:T(1,128)}', space=vmem, size = 0x12000, scoped, tag = 'internal scratch']
  #allocation2 [shape = 'f32[1,1]{1,0:T(1,128)S(1)}', space=vmem, size = 0x200, scoped, tag = 'scoped memory for tpu_custom_call.1']
  %s0 = inlined_call_operand.hbm [shape: f32[384,128], index: 0, kind: input, shape index: {}]
  %s1 = inlined_call_operand.hbm [shape: f32[384,128], index: 1, kind: input, shape index: {}]
  %s2 = inlined_call_operand.vmem [shape: bf16[256,128], index: 2, kind: input, shape index: {}]
  %s3 = inlined_call_operand.vmem [shape: f32[1,128], index: 3, kind: input, shape index: {}]
  %s4 = inlined_call_operand.vmem [shape: bf16[128,64], index: 4, kind: input, shape index: {}]
  %s5 = inlined_call_operand.vmem [shape: f32[1,64], index: 5, kind: input, shape index: {}]
  %s6 = inlined_call_operand.vmem [shape: bf16[64,32], index: 6, kind: input, shape index: {}]
  %s7 = inlined_call_operand.vmem [shape: f32[1,32], index: 7, kind: input, shape index: {}]
  %s8 = inlined_call_operand.vmem [shape: bf16[32,16], index: 8, kind: input, shape index: {}]
  %s9 = inlined_call_operand.vmem [shape: f32[1,16], index: 9, kind: input, shape index: {}]
  %s10 = inlined_call_operand.vmem [shape: bf16[1,16], index: 10, kind: input, shape index: {}]
  %s11 = inlined_call_operand.<no memory space> [shape: f32[1,1], index: 11, kind: input, shape index: {}]
  %s12 = inlined_call_operand.hbm [shape: f32[1,384], index: 12, kind: output, shape index: {}]
  %s13 = sld [smem:[#allocation0]]
  $region89: #{tpu_custom_call.1} parent=0
    _
  %s15 = ssub.s32 1, %s13
  %s16 = scalar_select 0, %s15, %s13
  %v17 = vstv %s11
  %18 = vst [vmem:[#allocation2] sm:$0x1] %v17
  $region1: #{tpu_custom_call.1} parent=0
    #allocation3 [shape = 'u8[131072]{0}', space=vmem, size = 0x20000, scoped, tag = 'input window, operand 0']
    #allocation4 [shape = 's32[2]{0}', space=sflag, size = 0x8, scoped, tag = 'scoped memory for tpu_custom_call.1']
    #allocation5 [shape = 's32[2]{0}', space=sflag, size = 0x8, scoped, tag = 'scoped memory for tpu_custom_call.1']
    #allocation6 [shape = 'u8[131072]{0}', space=vmem, size = 0x20000, scoped, tag = 'input window, operand 1']
    #allocation7 [shape = 's32[2]{0}', space=sflag, size = 0x8, scoped, tag = 'scoped memory for tpu_custom_call.1']
    #allocation8 [shape = 'u8[1024]{0}', space=vmem, size = 0x400, scoped, tag = 'output window, operand 0']
    %19 = vsyncpa [#allocation4], 0
    %s20 = scalar_lea.sflag [#allocation4], 1
    %21 = vsyncpa %s20, 0
    %22 = vsyncpa [#allocation7], 0
    %s23 = scalar_lea.sflag [#allocation7], 1
    %24 = vsyncpa %s23, 0
    %25 = vsyncpa [#allocation5], 0
    %s26 = scalar_lea.sflag [#allocation5], 1
    %27 = vsyncpa %s26, 0
    loop: start=0, step=1, limit=5
    $region2: #{tpu_custom_call.1} parent=1 // loop_pre_header
      _
    $region3: #{tpu_custom_call.1} parent=1 // loop_header
      %s29 = sphi 0, %s33
      %p30 = scmp.ge.s32.totalorder %s29, 5
      %s39 = sphi 0, %s41
      %s42 = sphi 0, %s39
      %s43 = sphi 0, %s42
      %s59 = sphi 0, %s43
      %s65 = sphi 0, %s67
      %s68 = sphi 0, %s65
      %s69 = sphi 0, %s68
      %s85 = sphi 0, %s69
      %s89 = sphi 0, %s89
      %s91 = sphi 0, %s89
      %s92 = sphi 0, %s91
      %s106 = sphi 0, %s92
      %s110 = sphi 0, %s110
      %s112 = sphi 0, %s110
      %s113 = sphi 0, %s112
      %s127 = sphi 0, %s113
      %s131 = sphi 0, %s131
      %s133 = sphi 0, %s131
      %s134 = sphi 0, %s133
      %s148 = sphi 0, %s134
      %s152 = sphi 0, %s152
      %s154 = sphi 0, %s152
      %s155 = sphi 0, %s154
      %s169 = sphi 0, %s155
      %s173 = sphi 0, %s173
      %s175 = sphi 0, %s173
      %s176 = sphi 0, %s175
      %s190 = sphi 0, %s176
      %s194 = sphi 0, %s194
      %s196 = sphi 0, %s194
      %s197 = sphi 0, %s196
      %s211 = sphi 0, %s197
      %s215 = sphi 0, %s215
      %s217 = sphi 0, %s215
      %s218 = sphi 0, %s217
      %s232 = sphi 0, %s218
      %s236 = sphi 0, %s236
      %s238 = sphi 0, %s236
      %s239 = sphi 0, %s238
      %s253 = sphi 0, %s239
      %s257 = sphi 0, %s257
      %s259 = sphi 0, %s257
      %s260 = sphi 0, %s259
      %s274 = sphi 0, %s260
      %s278 = sphi 0, %s278
      %s280 = sphi 0, %s278
      %s281 = sphi 0, %s280
      %s295 = sphi 0, %s281
      %s301 = sphi 0, %s303
      %s304 = sphi 0, %s301
      %s305 = sphi 0, %s304
      %s321 = sphi 0, %s305
    $region4: #{tpu_custom_call.1} parent=1 // loop_header_branch
      %32 = sbr.rel (%p30) target = $region8
    $region5: #{tpu_custom_call.1} parent=1 // loop_body
      %s34 = ssub.s32 %s29, 1
      %s35 = ssub.s32 %s29, 2
      %s36 = sadd.s32 %s29, 1
      %s37 = ssub.s32 %s29, %s36
      %p38 = scmp.eq.s32.totalorder %s37, 0
      %s40 = sadd.s32 %s39, 1
      %s41 = scalar_select %p38, %s39, %s40
      %p44 = pneg %p38
      %p45 = scmp.eq.s32.totalorder %s29, 2
      %p46 = por %p44, %p45
      %p47 = scmp.ne.s32.totalorder %s39, %s42
      %p48 = scmp.eq.s32.totalorder %s29, 0
      %p49 = por %p47, %p48
      %p50 = scmp.ne.s32.totalorder %s39, %s42
      %p51 = scmp.eq.s32.totalorder %s34, 2
      %p52 = por %p50, %p51
      %p53 = scmp.ne.s32.totalorder %s42, %s43
      %p54 = scmp.eq.s32.totalorder %s34, 0
      %p55 = por %p53, %p54
      %p56 = scmp.ne.s32.totalorder %s42, %s43
      %p57 = scmp.eq.s32.totalorder %s35, 2
      %p58 = por %p56, %p57
      %p60 = scmp.ne.s32.totalorder %s43, %s59
      %p61 = scmp.eq.s32.totalorder %s35, 0
      %p62 = por %p60, %p61
      %s63 = ssub.s32 %s29, %s36
      %p64 = scmp.eq.s32.totalorder %s63, 0
      %s66 = sadd.s32 %s65, 1
      %s67 = scalar_select %p64, %s65, %s66
      %p70 = pneg %p64
      %p71 = scmp.eq.s32.totalorder %s29, 2
      %p72 = por %p70, %p71
      %p73 = scmp.ne.s32.totalorder %s65, %s68
      %p74 = scmp.eq.s32.totalorder %s29, 0
      %p75 = por %p73, %p74
      %p76 = scmp.ne.s32.totalorder %s65, %s68
      %p77 = scmp.eq.s32.totalorder %s34, 2
      %p78 = por %p76, %p77
      %p79 = scmp.ne.s32.totalorder %s68, %s69
      %p80 = scmp.eq.s32.totalorder %s34, 0
      %p81 = por %p79, %p80
      %p82 = scmp.ne.s32.totalorder %s68, %s69
      %p83 = scmp.eq.s32.totalorder %s35, 2
      %p84 = por %p82, %p83
      %p86 = scmp.ne.s32.totalorder %s69, %s85
      %p87 = scmp.eq.s32.totalorder %s35, 0
      %p88 = por %p86, %p87
      %s90 = sadd.s32 %s89, 1
      %p93 = scmp.eq.s32.totalorder %s29, 2
      %p94 = scmp.ne.s32.totalorder %s89, %s91
      %p95 = scmp.eq.s32.totalorder %s29, 0
      %p96 = por %p94, %p95
      %p97 = scmp.ne.s32.totalorder %s89, %s91
      %p98 = scmp.eq.s32.totalorder %s34, 2
      %p99 = por %p97, %p98
      %p100 = scmp.ne.s32.totalorder %s91, %s92
      %p101 = scmp.eq.s32.totalorder %s34, 0
      %p102 = por %p100, %p101
      %p103 = scmp.ne.s32.totalorder %s91, %s92
      %p104 = scmp.eq.s32.totalorder %s35, 2
      %p105 = por %p103, %p104
      %p107 = scmp.ne.s32.totalorder %s92, %s106
      %p108 = scmp.eq.s32.totalorder %s35, 0
      %p109 = por %p107, %p108
      %s111 = sadd.s32 %s110, 1
      %p114 = scmp.eq.s32.totalorder %s29, 2
      %p115 = scmp.ne.s32.totalorder %s110, %s112
      %p116 = scmp.eq.s32.totalorder %s29, 0
      %p117 = por %p115, %p116
      %p118 = scmp.ne.s32.totalorder %s110, %s112
      %p119 = scmp.eq.s32.totalorder %s34, 2
      %p120 = por %p118, %p119
      %p121 = scmp.ne.s32.totalorder %s112, %s113
      %p122 = scmp.eq.s32.totalorder %s34, 0
      %p123 = por %p121, %p122
      %p124 = scmp.ne.s32.totalorder %s112, %s113
      %p125 = scmp.eq.s32.totalorder %s35, 2
      %p126 = por %p124, %p125
      %p128 = scmp.ne.s32.totalorder %s113, %s127
      %p129 = scmp.eq.s32.totalorder %s35, 0
      %p130 = por %p128, %p129
      %s132 = sadd.s32 %s131, 1
      %p135 = scmp.eq.s32.totalorder %s29, 2
      %p136 = scmp.ne.s32.totalorder %s131, %s133
      %p137 = scmp.eq.s32.totalorder %s29, 0
      %p138 = por %p136, %p137
      %p139 = scmp.ne.s32.totalorder %s131, %s133
      %p140 = scmp.eq.s32.totalorder %s34, 2
      %p141 = por %p139, %p140
      %p142 = scmp.ne.s32.totalorder %s133, %s134
      %p143 = scmp.eq.s32.totalorder %s34, 0
      %p144 = por %p142, %p143
      %p145 = scmp.ne.s32.totalorder %s133, %s134
      %p146 = scmp.eq.s32.totalorder %s35, 2
      %p147 = por %p145, %p146
      %p149 = scmp.ne.s32.totalorder %s134, %s148
      %p150 = scmp.eq.s32.totalorder %s35, 0
      %p151 = por %p149, %p150
      %s153 = sadd.s32 %s152, 1
      %p156 = scmp.eq.s32.totalorder %s29, 2
      %p157 = scmp.ne.s32.totalorder %s152, %s154
      %p158 = scmp.eq.s32.totalorder %s29, 0
      %p159 = por %p157, %p158
      %p160 = scmp.ne.s32.totalorder %s152, %s154
      %p161 = scmp.eq.s32.totalorder %s34, 2
      %p162 = por %p160, %p161
      %p163 = scmp.ne.s32.totalorder %s154, %s155
      %p164 = scmp.eq.s32.totalorder %s34, 0
      %p165 = por %p163, %p164
      %p166 = scmp.ne.s32.totalorder %s154, %s155
      %p167 = scmp.eq.s32.totalorder %s35, 2
      %p168 = por %p166, %p167
      %p170 = scmp.ne.s32.totalorder %s155, %s169
      %p171 = scmp.eq.s32.totalorder %s35, 0
      %p172 = por %p170, %p171
      %s174 = sadd.s32 %s173, 1
      %p177 = scmp.eq.s32.totalorder %s29, 2
      %p178 = scmp.ne.s32.totalorder %s173, %s175
      %p179 = scmp.eq.s32.totalorder %s29, 0
      %p180 = por %p178, %p179
      %p181 = scmp.ne.s32.totalorder %s173, %s175
      %p182 = scmp.eq.s32.totalorder %s34, 2
      %p183 = por %p181, %p182
      %p184 = scmp.ne.s32.totalorder %s175, %s176
      %p185 = scmp.eq.s32.totalorder %s34, 0
      %p186 = por %p184, %p185
      %p187 = scmp.ne.s32.totalorder %s175, %s176
      %p188 = scmp.eq.s32.totalorder %s35, 2
      %p189 = por %p187, %p188
      %p191 = scmp.ne.s32.totalorder %s176, %s190
      %p192 = scmp.eq.s32.totalorder %s35, 0
      %p193 = por %p191, %p192
      %s195 = sadd.s32 %s194, 1
      %p198 = scmp.eq.s32.totalorder %s29, 2
      %p199 = scmp.ne.s32.totalorder %s194, %s196
      %p200 = scmp.eq.s32.totalorder %s29, 0
      %p201 = por %p199, %p200
      %p202 = scmp.ne.s32.totalorder %s194, %s196
      %p203 = scmp.eq.s32.totalorder %s34, 2
      %p204 = por %p202, %p203
      %p205 = scmp.ne.s32.totalorder %s196, %s197
      %p206 = scmp.eq.s32.totalorder %s34, 0
      %p207 = por %p205, %p206
      %p208 = scmp.ne.s32.totalorder %s196, %s197
      %p209 = scmp.eq.s32.totalorder %s35, 2
      %p210 = por %p208, %p209
      %p212 = scmp.ne.s32.totalorder %s197, %s211
      %p213 = scmp.eq.s32.totalorder %s35, 0
      %p214 = por %p212, %p213
      %s216 = sadd.s32 %s215, 1
      %p219 = scmp.eq.s32.totalorder %s29, 2
      %p220 = scmp.ne.s32.totalorder %s215, %s217
      %p221 = scmp.eq.s32.totalorder %s29, 0
      %p222 = por %p220, %p221
      %p223 = scmp.ne.s32.totalorder %s215, %s217
      %p224 = scmp.eq.s32.totalorder %s34, 2
      %p225 = por %p223, %p224
      %p226 = scmp.ne.s32.totalorder %s217, %s218
      %p227 = scmp.eq.s32.totalorder %s34, 0
      %p228 = por %p226, %p227
      %p229 = scmp.ne.s32.totalorder %s217, %s218
      %p230 = scmp.eq.s32.totalorder %s35, 2
      %p231 = por %p229, %p230
      %p233 = scmp.ne.s32.totalorder %s218, %s232
      %p234 = scmp.eq.s32.totalorder %s35, 0
      %p235 = por %p233, %p234
      %s237 = sadd.s32 %s236, 1
      %p240 = scmp.eq.s32.totalorder %s29, 2
      %p241 = scmp.ne.s32.totalorder %s236, %s238
      %p242 = scmp.eq.s32.totalorder %s29, 0
      %p243 = por %p241, %p242
      %p244 = scmp.ne.s32.totalorder %s236, %s238
      %p245 = scmp.eq.s32.totalorder %s34, 2
      %p246 = por %p244, %p245
      %p247 = scmp.ne.s32.totalorder %s238, %s239
      %p248 = scmp.eq.s32.totalorder %s34, 0
      %p249 = por %p247, %p248
      %p250 = scmp.ne.s32.totalorder %s238, %s239
      %p251 = scmp.eq.s32.totalorder %s35, 2
      %p252 = por %p250, %p251
      %p254 = scmp.ne.s32.totalorder %s239, %s253
      %p255 = scmp.eq.s32.totalorder %s35, 0
      %p256 = por %p254, %p255
      %s258 = sadd.s32 %s257, 1
      %p261 = scmp.eq.s32.totalorder %s29, 2
      %p262 = scmp.ne.s32.totalorder %s257, %s259
      %p263 = scmp.eq.s32.totalorder %s29, 0
      %p264 = por %p262, %p263
      %p265 = scmp.ne.s32.totalorder %s257, %s259
      %p266 = scmp.eq.s32.totalorder %s34, 2
      %p267 = por %p265, %p266
      %p268 = scmp.ne.s32.totalorder %s259, %s260
      %p269 = scmp.eq.s32.totalorder %s34, 0
      %p270 = por %p268, %p269
      %p271 = scmp.ne.s32.totalorder %s259, %s260
      %p272 = scmp.eq.s32.totalorder %s35, 2
      %p273 = por %p271, %p272
      %p275 = scmp.ne.s32.totalorder %s260, %s274
      %p276 = scmp.eq.s32.totalorder %s35, 0
      %p277 = por %p275, %p276
      %s279 = sadd.s32 %s278, 1
      %p282 = scmp.eq.s32.totalorder %s29, 2
      %p283 = scmp.ne.s32.totalorder %s278, %s280
      %p284 = scmp.eq.s32.totalorder %s29, 0
      %p285 = por %p283, %p284
      %p286 = scmp.ne.s32.totalorder %s278, %s280
      %p287 = scmp.eq.s32.totalorder %s34, 2
      %p288 = por %p286, %p287
      %p289 = scmp.ne.s32.totalorder %s280, %s281
      %p290 = scmp.eq.s32.totalorder %s34, 0
      %p291 = por %p289, %p290
      %p292 = scmp.ne.s32.totalorder %s280, %s281
      %p293 = scmp.eq.s32.totalorder %s35, 2
      %p294 = por %p292, %p293
      %p296 = scmp.ne.s32.totalorder %s281, %s295
      %p297 = scmp.eq.s32.totalorder %s35, 0
      %p298 = por %p296, %p297
      %s299 = ssub.s32 %s29, %s36
      %p300 = scmp.eq.s32.totalorder %s299, 0
      %s302 = sadd.s32 %s301, 1
      %s303 = scalar_select %p300, %s301, %s302
      %p306 = pneg %p300
      %p307 = scmp.eq.s32.totalorder %s29, 2
      %p308 = por %p306, %p307
      %p309 = scmp.ne.s32.totalorder %s301, %s304
      %p310 = scmp.eq.s32.totalorder %s29, 0
      %p311 = por %p309, %p310
      %p312 = scmp.ne.s32.totalorder %s301, %s304
      %p313 = scmp.eq.s32.totalorder %s34, 2
      %p314 = por %p312, %p313
      %p315 = scmp.ne.s32.totalorder %s304, %s305
      %p316 = scmp.eq.s32.totalorder %s34, 0
      %p317 = por %p315, %p316
      %p318 = scmp.ne.s32.totalorder %s304, %s305
      %p319 = scmp.eq.s32.totalorder %s35, 2
      %p320 = por %p318, %p319
      %p322 = scmp.ne.s32.totalorder %s305, %s321
      %p323 = scmp.eq.s32.totalorder %s35, 0
      %p324 = por %p322, %p323
      %p325 = scmp.le.s32.totalorder 1, %s29
      %p326 = scmp.lt.s32.totalorder %s29, 4
      %p327 = pnand %p325, %p326
      %p328 = pneg %p327
      // Predicated region
      $region9: #{tpu_custom_call.1} parent=5 // pred_check
        _
      $region10: #{tpu_custom_call.1} parent=5 // pred_check_branch
        %330 = sbr.rel (%p327) target = $region12
      $region11: #{tpu_custom_call.1} parent=5 // pred_region
        %s331 = ssub.s32 %s29, 1
        // Predicated region
        $region13: #{tpu_custom_call.1} parent=11 // pred_check
          %p332 = pneg %p102
        $region14: #{tpu_custom_call.1} parent=11 // pred_check_branch
          %334 = sbr.rel (%p332) target = $region16
        $region15: #{tpu_custom_call.1} parent=11 // pred_region
          _
        $region16: #{tpu_custom_call.1} parent=11 // pred_fallthru
          _
        // Predicated region
        $region17: #{tpu_custom_call.1} parent=11 // pred_check
          %p335 = pneg %p123
        $region18: #{tpu_custom_call.1} parent=11 // pred_check_branch
          %337 = sbr.rel (%p335) target = $region20
        $region19: #{tpu_custom_call.1} parent=11 // pred_region
          _
        $region20: #{tpu_custom_call.1} parent=11 // pred_fallthru
          _
        // Predicated region
        $region21: #{tpu_custom_call.1} parent=11 // pred_check
          %p338 = pneg %p144
        $region22: #{tpu_custom_call.1} parent=11 // pred_check_branch
          %340 = sbr.rel (%p338) target = $region24
        $region23: #{tpu_custom_call.1} parent=11 // pred_region
          _
        $region24: #{tpu_custom_call.1} parent=11 // pred_fallthru
          _
        // Predicated region
        $region25: #{tpu_custom_call.1} parent=11 // pred_check
          %p341 = pneg %p165
        $region26: #{tpu_custom_call.1} parent=11 // pred_check_branch
          %343 = sbr.rel (%p341) target = $region28
        $region27: #{tpu_custom_call.1} parent=11 // pred_region
          _
        $region28: #{tpu_custom_call.1} parent=11 // pred_fallthru
          _
        // Predicated region
        $region29: #{tpu_custom_call.1} parent=11 // pred_check
          %p344 = pneg %p186
        $region30: #{tpu_custom_call.1} parent=11 // pred_check_branch
          %346 = sbr.rel (%p344) target = $region32
        $region31: #{tpu_custom_call.1} parent=11 // pred_region
          _
        $region32: #{tpu_custom_call.1} parent=11 // pred_fallthru
          _
        // Predicated region
        $region33: #{tpu_custom_call.1} parent=11 // pred_check
          %p347 = pneg %p207
        $region34: #{tpu_custom_call.1} parent=11 // pred_check_branch
          %349 = sbr.rel (%p347) target = $region36
        $region35: #{tpu_custom_call.1} parent=11 // pred_region
          _
        $region36: #{tpu_custom_call.1} parent=11 // pred_fallthru
          _
        // Predicated region
        $region37: #{tpu_custom_call.1} parent=11 // pred_check
          %p350 = pneg %p228
        $region38: #{tpu_custom_call.1} parent=11 // pred_check_branch
          %352 = sbr.rel (%p350) target = $region40
        $region39: #{tpu_custom_call.1} parent=11 // pred_region
          _
        $region40: #{tpu_custom_call.1} parent=11 // pred_fallthru
          _
        // Predicated region
        $region41: #{tpu_custom_call.1} parent=11 // pred_check
          %p353 = pneg %p249
        $region42: #{tpu_custom_call.1} parent=11 // pred_check_branch
          %355 = sbr.rel (%p353) target = $region44
        $region43: #{tpu_custom_call.1} parent=11 // pred_region
          _
        $region44: #{tpu_custom_call.1} parent=11 // pred_fallthru
          _
        // Predicated region
        $region45: #{tpu_custom_call.1} parent=11 // pred_check
          %p356 = pneg %p270
        $region46: #{tpu_custom_call.1} parent=11 // pred_check_branch
          %358 = sbr.rel (%p356) target = $region48
        $region47: #{tpu_custom_call.1} parent=11 // pred_region
          _
        $region48: #{tpu_custom_call.1} parent=11 // pred_fallthru
          _
        // Predicated region
        $region49: #{tpu_custom_call.1} parent=11 // pred_check
          %p359 = pneg %p291
        $region50: #{tpu_custom_call.1} parent=11 // pred_check_branch
          %361 = sbr.rel (%p359) target = $region52
        $region51: #{tpu_custom_call.1} parent=11 // pred_region
          _
        $region52: #{tpu_custom_call.1} parent=11 // pred_fallthru
          _
      $region12: #{tpu_custom_call.1} parent=5 // pred_fallthru
        _
      %p362 = scmp.lt.s32.totalorder %s29, 3
      // Predicated region
      $region53: #{tpu_custom_call.1} parent=5 // pred_check
        %p363 = pneg %p362
      $region54: #{tpu_custom_call.1} parent=5 // pred_check_branch
        %365 = sbr.rel (%p363) target = $region56
      $region55: #{tpu_custom_call.1} parent=5 // pred_region
        // Predicated region
        $region57: #{tpu_custom_call.1} parent=55 // pred_check
          %p366 = pneg %p49
        $region58: #{tpu_custom_call.1} parent=55 // pred_check_branch
          %368 = sbr.rel (%p366) target = $region60
        $region59: #{tpu_custom_call.1} parent=55 // pred_region
          %s369 = sand.u32 %s39, 1
          %s370 = scalar_lea.sflag [#allocation4], %s369
          %s371 = sand.u32 %s39, 1
          %s372 = smul.addr %s371, 128
          %s373 = scalar_lea.vmem [#allocation3], %s372
          %s374 = smul.u32 16, %s29
          %s376 = ssub.s32 2048, 2048
          %377 = vsyncadd %s370, %s376
          %s378 = smul.addr %s374, 128
          %s379 = scalar_lea.hbm %s0, %s378
          %s380 = sshll.u32 %s373, 4
          %s381 = int_to_ptr.vmem [resolvable:$true] %s380
          %386 = dma.hbm_to_vmem [thread:$0]  %s379, 2048, %s381, %s370, 128, 128, 8
        $region60: #{tpu_custom_call.1} parent=55 // pred_fallthru
          _
        // Predicated region
        $region61: #{tpu_custom_call.1} parent=55 // pred_check
          %p387 = pneg %p75
        $region62: #{tpu_custom_call.1} parent=55 // pred_check_branch
          %389 = sbr.rel (%p387) target = $region64
        $region63: #{tpu_custom_call.1} parent=55 // pred_region
          %s390 = sand.u32 %s65, 1
          %s391 = scalar_lea.sflag [#allocation7], %s390
          %s392 = sand.u32 %s65, 1
          %s393 = smul.addr %s392, 128
          %s394 = scalar_lea.vmem [#allocation6], %s393
          %s395 = smul.u32 16, %s29
          %s397 = ssub.s32 2048, 2048
          %398 = vsyncadd %s391, %s397
          %s399 = smul.addr %s395, 128
          %s400 = scalar_lea.hbm %s1, %s399
          %s401 = sshll.u32 %s394, 4
          %s402 = int_to_ptr.vmem [resolvable:$true] %s401
          %407 = dma.hbm_to_vmem [thread:$0]  %s400, 2048, %s402, %s391, 128, 128, 8
        $region64: #{tpu_custom_call.1} parent=55 // pred_fallthru
          _
      $region56: #{tpu_custom_call.1} parent=5 // pred_fallthru
        _
      %p408 = scmp.le.s32.totalorder 1, %s29
      %p409 = scmp.lt.s32.totalorder %s29, 4
      %p410 = pnand %p408, %p409
      %p411 = pneg %p410
      // Predicated region
      $region65: #{tpu_custom_call.1} parent=5 // pred_check
        _
      $region66: #{tpu_custom_call.1} parent=5 // pred_check_branch
        %413 = sbr.rel (%p410) target = $region68
      $region67: #{tpu_custom_call.1} parent=5 // pred_region
        %s414 = ssub.s32 %s29, 1
        %s415 = sand.u32 %s42, 1
        %s416 = scalar_lea.sflag [#allocation4], %s415
        %s417 = sand.u32 %s42, 1
        %s418 = smul.addr %s417, 128
        %s419 = scalar_lea.vmem [#allocation3], %s418
        // Predicated region
        $region69: #{tpu_custom_call.1} parent=67 // pred_check
          %p420 = pneg %p55
        $region70: #{tpu_custom_call.1} parent=67 // pred_check_branch
          %422 = sbr.rel (%p420) target = $region72
        $region71: #{tpu_custom_call.1} parent=67 // pred_region
          %423 = dma.done %s416, 2048
        $region72: #{tpu_custom_call.1} parent=67 // pred_fallthru
          _
        %s424 = sand.u32 %s68, 1
        %s425 = scalar_lea.sflag [#allocation7], %s424
        %s426 = sand.u32 %s68, 1
        %s427 = smul.addr %s426, 128
        %s428 = scalar_lea.vmem [#allocation6], %s427
        // Predicated region
        $region73: #{tpu_custom_call.1} parent=67 // pred_check
          %p429 = pneg %p81
        $region74: #{tpu_custom_call.1} parent=67 // pred_check_branch
          %431 = sbr.rel (%p429) target = $region76
        $region75: #{tpu_custom_call.1} parent=67 // pred_region
          %432 = dma.done %s425, 2048
        $region76: #{tpu_custom_call.1} parent=67 // pred_fallthru
          _
        %s433 = sand.u32 %s42, 1
        %s434 = scalar_lea.sflag [#allocation4], %s433
        %s435 = sand.u32 %s42, 1
        %s436 = smul.addr %s435, 128
        %s437 = scalar_lea.vmem [#allocation3], %s436
        %p438 = pneg %p55
        %p439 = pneg %p52
        %s440 = sand.u32 %s68, 1
        %s441 = scalar_lea.sflag [#allocation7], %s440
        %s442 = sand.u32 %s68, 1
        %s443 = smul.addr %s442, 128
        %s444 = scalar_lea.vmem [#allocation6], %s443
        %p445 = pneg %p81
        %p446 = pneg %p78
        %p447 = pneg %p102
        %p448 = pneg %p99
        %p449 = pneg %p123
        %p450 = pneg %p120
        %p451 = pneg %p144
        %p452 = pneg %p141
        %p453 = pneg %p165
        %p454 = pneg %p162
        %p455 = pneg %p186
        %p456 = pneg %p183
        %p457 = pneg %p207
        %p458 = pneg %p204
        %p459 = pneg %p228
        %p460 = pneg %p225
        %p461 = pneg %p249
        %p462 = pneg %p246
        %p463 = pneg %p270
        %p464 = pneg %p267
        %p465 = pneg %p291
        %p466 = pneg %p288
        %p467 = pneg %p317
        %p468 = pneg %p314
        %s469 = sand.u32 %s304, 1
        %s470 = scalar_lea.sflag [#allocation5], %s469
        %s471 = sand.u32 %s304, 1
        %s472 = scalar_lea.vmem [#allocation8], %s471
        %s473 = smul.u32 16, %s34
        %s474 = smul.u32 16, %s34
        %v476 = vld [vmem:[%s419] sm:$0xff]
        %v477 = vld [vmem:[%s419 + $0x8] sm:$0xff]
        %v478 = vld [vmem:[%s419 + $0x10] sm:$0xff]
        %v479 = vld [vmem:[%s419 + $0x18] sm:$0xff]
        %v480 = vld [vmem:[%s419 + $0x20] sm:$0xff]
        %v481 = vld [vmem:[%s419 + $0x28] sm:$0xff]
        %v482 = vld [vmem:[%s419 + $0x30] sm:$0xff]
        %v483 = vld [vmem:[%s419 + $0x38] sm:$0xff]
        %v484 = vld [vmem:[%s419 + $0x40] sm:$0xff]
        %v485 = vld [vmem:[%s419 + $0x48] sm:$0xff]
        %v486 = vld [vmem:[%s419 + $0x50] sm:$0xff]
        %v487 = vld [vmem:[%s419 + $0x58] sm:$0xff]
        %v488 = vld [vmem:[%s419 + $0x60] sm:$0xff]
        %v489 = vld [vmem:[%s419 + $0x68] sm:$0xff]
        %v490 = vld [vmem:[%s419 + $0x70] sm:$0xff]
        %v491 = vld [vmem:[%s419 + $0x78] sm:$0xff]
        %v492 = vpack.c.bf16 %v477, %v476
        %v493 = vpack.c.bf16 %v479, %v478
        %v494 = vpack.c.bf16 %v481, %v480
        %v495 = vpack.c.bf16 %v483, %v482
        %v496 = vpack.c.bf16 %v485, %v484
        %v497 = vpack.c.bf16 %v487, %v486
        %v498 = vpack.c.bf16 %v489, %v488
        %v499 = vpack.c.bf16 %v491, %v490
        %v500 = vld [vmem:[%s428] sm:$0xff]
        %v501 = vld [vmem:[%s428 + $0x8] sm:$0xff]
        %v502 = vld [vmem:[%s428 + $0x10] sm:$0xff]
        %v503 = vld [vmem:[%s428 + $0x18] sm:$0xff]
        %v504 = vld [vmem:[%s428 + $0x20] sm:$0xff]
        %v505 = vld [vmem:[%s428 + $0x28] sm:$0xff]
        %v506 = vld [vmem:[%s428 + $0x30] sm:$0xff]
        %v507 = vld [vmem:[%s428 + $0x38] sm:$0xff]
        %v508 = vld [vmem:[%s428 + $0x40] sm:$0xff]
        %v509 = vld [vmem:[%s428 + $0x48] sm:$0xff]
        %v510 = vld [vmem:[%s428 + $0x50] sm:$0xff]
        %v511 = vld [vmem:[%s428 + $0x58] sm:$0xff]
        %v512 = vld [vmem:[%s428 + $0x60] sm:$0xff]
        %v513 = vld [vmem:[%s428 + $0x68] sm:$0xff]
        %v514 = vld [vmem:[%s428 + $0x70] sm:$0xff]
        %v515 = vld [vmem:[%s428 + $0x78] sm:$0xff]
        %v516 = vpack.c.bf16 %v501, %v500
        %v517 = vpack.c.bf16 %v503, %v502
        %v518 = vpack.c.bf16 %v505, %v504
        %v519 = vpack.c.bf16 %v507, %v506
        %v520 = vpack.c.bf16 %v509, %v508
        %v521 = vpack.c.bf16 %v511, %v510
        %v522 = vpack.c.bf16 %v513, %v512
        %v523 = vpack.c.bf16 %v515, %v514
        %v524 = vld [vmem:[%s2] sm:$0xf]
        %v525 = vld [vmem:[%s2 + $0x4] sm:$0xf]
        %v526 = vld [vmem:[%s2 + $0x8] sm:$0xf]
        %v527 = vld [vmem:[%s2 + $0xc] sm:$0xf]
        %v528 = vld [vmem:[%s2 + $0x10] sm:$0xf]
        %v529 = vld [vmem:[%s2 + $0x14] sm:$0xf]
        %v530 = vld [vmem:[%s2 + $0x18] sm:$0xf]
        %v531 = vld [vmem:[%s2 + $0x1c] sm:$0xf]
        %v532 = vld [vmem:[%s2 + $0x20] sm:$0xf]
        %v533 = vld [vmem:[%s2 + $0x24] sm:$0xf]
        %v534 = vld [vmem:[%s2 + $0x28] sm:$0xf]
        %v535 = vld [vmem:[%s2 + $0x2c] sm:$0xf]
        %v536 = vld [vmem:[%s2 + $0x30] sm:$0xf]
        %v537 = vld [vmem:[%s2 + $0x34] sm:$0xf]
        %v538 = vld [vmem:[%s2 + $0x38] sm:$0xf]
        %v539 = vld [vmem:[%s2 + $0x3c] sm:$0xf]
        %v540 = vld [vmem:[%s2 + $0x40] sm:$0xf]
        %v541 = vld [vmem:[%s2 + $0x44] sm:$0xf]
        %v542 = vld [vmem:[%s2 + $0x48] sm:$0xf]
        %v543 = vld [vmem:[%s2 + $0x4c] sm:$0xf]
        %v544 = vld [vmem:[%s2 + $0x50] sm:$0xf]
        %v545 = vld [vmem:[%s2 + $0x54] sm:$0xf]
        %v546 = vld [vmem:[%s2 + $0x58] sm:$0xf]
        %v547 = vld [vmem:[%s2 + $0x5c] sm:$0xf]
        %v548 = vld [vmem:[%s2 + $0x60] sm:$0xf]
        %v549 = vld [vmem:[%s2 + $0x64] sm:$0xf]
        %v550 = vld [vmem:[%s2 + $0x68] sm:$0xf]
        %v551 = vld [vmem:[%s2 + $0x6c] sm:$0xf]
        %v552 = vld [vmem:[%s2 + $0x70] sm:$0xf]
        %v553 = vld [vmem:[%s2 + $0x74] sm:$0xf]
        %v554 = vld [vmem:[%s2 + $0x78] sm:$0xf]
        %v555 = vld [vmem:[%s2 + $0x7c] sm:$0xf]
        %v556 = vld [vmem:[%s3] sm:$0x1]
        %v558 = vlaneseq
        %v559 = vshrl.u32 %v558, 7
        %v560 = vsub.s32 0, %v559
        %v561 = vrot.slane %v556, %v560
        %v595 = vunpack.c.l.b16 %v524
        %v596 = vunpack.c.l.b16 %v525
        %v597 = vunpack.c.l.b16 %v526
        %v598 = vunpack.c.l.b16 %v527
        %v599 = vunpack.c.l.b16 %v528
        %v600 = vunpack.c.l.b16 %v529
        %v601 = vunpack.c.l.b16 %v530
        %v602 = vunpack.c.l.b16 %v531
        %v603 = vunpack.c.l.b16 %v532
        %v604 = vunpack.c.l.b16 %v533
        %v605 = vunpack.c.l.b16 %v534
        %v606 = vunpack.c.l.b16 %v535
        %v607 = vunpack.c.l.b16 %v536
        %v608 = vunpack.c.l.b16 %v537
        %v609 = vunpack.c.l.b16 %v538
        %v610 = vunpack.c.l.b16 %v539
        %v611 = vunpack.c.l.b16 %v540
        %v612 = vunpack.c.l.b16 %v541
        %v613 = vunpack.c.l.b16 %v542
        %v614 = vunpack.c.l.b16 %v543
        %v615 = vunpack.c.l.b16 %v544
        %v616 = vunpack.c.l.b16 %v545
        %v617 = vunpack.c.l.b16 %v546
        %v618 = vunpack.c.l.b16 %v547
        %v619 = vunpack.c.l.b16 %v548
        %v620 = vunpack.c.l.b16 %v549
        %v621 = vunpack.c.l.b16 %v550
        %v622 = vunpack.c.l.b16 %v551
        %v623 = vunpack.c.l.b16 %v552
        %v624 = vunpack.c.l.b16 %v553
        %v625 = vunpack.c.l.b16 %v554
        %v626 = vunpack.c.l.b16 %v555
        %v627 = vpack.c.b16 %v596, %v595
        %v628 = vpack.c.b16 %v598, %v597
        %v629 = vpack.c.b16 %v600, %v599
        %v630 = vpack.c.b16 %v602, %v601
        %v631 = vpack.c.b16 %v604, %v603
        %v632 = vpack.c.b16 %v606, %v605
        %v633 = vpack.c.b16 %v608, %v607
        %v634 = vpack.c.b16 %v610, %v609
        %v635 = vpack.c.b16 %v612, %v611
        %v636 = vpack.c.b16 %v614, %v613
        %v637 = vpack.c.b16 %v616, %v615
        %v638 = vpack.c.b16 %v618, %v617
        %v639 = vpack.c.b16 %v620, %v619
        %v640 = vpack.c.b16 %v622, %v621
        %v641 = vpack.c.b16 %v624, %v623
        %v642 = vpack.c.b16 %v626, %v625
        %659 = vmatprep.subr.bf16.mxu0 0
        %660 = vmatpush1.bf16.msra.mxu0 %v627
        %661 = vmatprep.subr.bf16.mxu0 0
        %662 = vmatpush1.bf16.msra.mxu0 %v628
        %663 = vmatprep.subr.bf16.mxu0 0
        %664 = vmatpush1.bf16.msra.mxu0 %v629
        %665 = vmatprep.subr.bf16.mxu0 0
        %666 = vmatpush1.bf16.msra.mxu0 %v630
        %667 = vmatprep.subr.bf16.mxu0 0
        %668 = vmatpush1.bf16.msra.mxu0 %v631
        %669 = vmatprep.subr.bf16.mxu0 0
        %670 = vmatpush1.bf16.msra.mxu0 %v632
        %671 = vmatprep.subr.bf16.mxu0 0
        %672 = vmatpush1.bf16.msra.mxu0 %v633
        %673 = vmatprep.subr.bf16.mxu0 0
        %674 = vmatpush1.bf16.msra.mxu0 %v634
        %675 = vmatprep.subr.bf16.mxu0 0
        %676 = vmatpush1.bf16.msra.mxu0 %v635
        %677 = vmatprep.subr.bf16.mxu0 0
        %678 = vmatpush1.bf16.msra.mxu0 %v636
        %679 = vmatprep.subr.bf16.mxu0 0
        %680 = vmatpush1.bf16.msra.mxu0 %v637
        %681 = vmatprep.subr.bf16.mxu0 0
        %682 = vmatpush1.bf16.msra.mxu0 %v638
        %683 = vmatprep.subr.bf16.mxu0 0
        %684 = vmatpush1.bf16.msra.mxu0 %v639
        %685 = vmatprep.subr.bf16.mxu0 0
        %686 = vmatpush1.bf16.msra.mxu0 %v640
        %687 = vmatprep.subr.bf16.mxu0 0
        %688 = vmatpush1.bf16.msra.mxu0 %v641
        %689 = vmatprep.subr.bf16.mxu0 0
        %690 = vmatpush1.bf16.msra.mxu0 %v642
        %691 = vmatprep.mubr.bf16.mxu0 %v516
        %692 = vmatmul.mubr.bf16.gmra.mrb[0].mxu0 %v492
        %v693 = vpop.f32.mrb[0].mxu0
        %v694 = vadd.f32 %v561, %v693
        %v695 = vpop.f32.mrb[0].mxu0
        %v696 = vpop.f32.mrb[0].mxu0
        %v697 = vadd.f32 %v561, %v696
        %v698 = vpop.f32.mrb[0].mxu0
        %699 = vmatprep.mubr.bf16.mxu0 %v517
        %700 = vmatmul.mubr.bf16.gmra.mrb[0].mxu0 %v493
        %v701 = vpop.f32.mrb[0].mxu0
        %v702 = vadd.f32 %v561, %v701
        %v703 = vpop.f32.mrb[0].mxu0
        %v704 = vpop.f32.mrb[0].mxu0
        %v705 = vadd.f32 %v561, %v704
        %v706 = vpop.f32.mrb[0].mxu0
        %707 = vmatprep.mubr.bf16.mxu0 %v518
        %708 = vmatmul.mubr.bf16.gmra.mrb[0].mxu0 %v494
        %v709 = vpop.f32.mrb[0].mxu0
        %v710 = vadd.f32 %v561, %v709
        %v711 = vpop.f32.mrb[0].mxu0
        %v712 = vpop.f32.mrb[0].mxu0
        %v713 = vadd.f32 %v561, %v712
        %v714 = vpop.f32.mrb[0].mxu0
        %715 = vmatprep.mubr.bf16.mxu0 %v519
        %716 = vmatmul.mubr.bf16.gmra.mrb[0].mxu0 %v495
        %v717 = vpop.f32.mrb[0].mxu0
        %v718 = vadd.f32 %v561, %v717
        %v719 = vpop.f32.mrb[0].mxu0
        %v720 = vpop.f32.mrb[0].mxu0
        %v721 = vadd.f32 %v561, %v720
        %v722 = vpop.f32.mrb[0].mxu0
        %723 = vmatprep.mubr.bf16.mxu0 %v520
        %724 = vmatmul.mubr.bf16.gmra.mrb[0].mxu0 %v496
        %v725 = vpop.f32.mrb[0].mxu0
        %v726 = vadd.f32 %v561, %v725
        %v727 = vpop.f32.mrb[0].mxu0
        %v728 = vpop.f32.mrb[0].mxu0
        %v729 = vadd.f32 %v561, %v728
        %v730 = vpop.f32.mrb[0].mxu0
        %731 = vmatprep.mubr.bf16.mxu0 %v521
        %732 = vmatmul.mubr.bf16.gmra.mrb[0].mxu0 %v497
        %v733 = vpop.f32.mrb[0].mxu0
        %v734 = vadd.f32 %v561, %v733
        %v735 = vpop.f32.mrb[0].mxu0
        %v736 = vpop.f32.mrb[0].mxu0
        %v737 = vadd.f32 %v561, %v736
        %v738 = vpop.f32.mrb[0].mxu0
        %739 = vmatprep.mubr.bf16.mxu0 %v522
        %740 = vmatmul.mubr.bf16.gmra.mrb[0].mxu0 %v498
        %v741 = vpop.f32.mrb[0].mxu0
        %v742 = vadd.f32 %v561, %v741
        %v743 = vpop.f32.mrb[0].mxu0
        %v744 = vpop.f32.mrb[0].mxu0
        %v745 = vadd.f32 %v561, %v744
        %v746 = vpop.f32.mrb[0].mxu0
        %747 = vmatprep.mubr.bf16.mxu0 %v523
        %748 = vmatmul.mubr.bf16.gmra.mrb[0].mxu0 %v499
        %v749 = vpop.f32.mrb[0].mxu0
        %v750 = vadd.f32 %v561, %v749
        %v751 = vpop.f32.mrb[0].mxu0
        %v752 = vpop.f32.mrb[0].mxu0
        %v753 = vadd.f32 %v561, %v752
        %v754 = vpop.f32.mrb[0].mxu0
        %755 = vdwg.mxu0
        %v756 = vmax.f32 %v694, -1.0
        %v757 = vmax.f32 %v697, -1.0
        %v758 = vmax.f32 %v702, -1.0
        %v759 = vmax.f32 %v705, -1.0
        %v760 = vmax.f32 %v710, -1.0
        %v761 = vmax.f32 %v713, -1.0
        %v762 = vmax.f32 %v718, -1.0
        %v763 = vmax.f32 %v721, -1.0
        %v764 = vmax.f32 %v726, -1.0
        %v765 = vmax.f32 %v729, -1.0
        %v766 = vmax.f32 %v734, -1.0
        %v767 = vmax.f32 %v737, -1.0
        %v768 = vmax.f32 %v742, -1.0
        %v769 = vmax.f32 %v745, -1.0
        %v770 = vmax.f32 %v750, -1.0
        %v771 = vmax.f32 %v753, -1.0
        %v772 = vmin.f32 %v756, 1.0
        %v773 = vmin.f32 %v757, 1.0
        %v774 = vmin.f32 %v758, 1.0
        %v775 = vmin.f32 %v759, 1.0
        %v776 = vmin.f32 %v760, 1.0
        %v777 = vmin.f32 %v761, 1.0
        %v778 = vmin.f32 %v762, 1.0
        %v779 = vmin.f32 %v763, 1.0
        %v780 = vmin.f32 %v764, 1.0
        %v781 = vmin.f32 %v765, 1.0
        %v782 = vmin.f32 %v766, 1.0
        %v783 = vmin.f32 %v767, 1.0
        %v784 = vmin.f32 %v768, 1.0
        %v785 = vmin.f32 %v769, 1.0
        %v786 = vmin.f32 %v770, 1.0
        %v787 = vmin.f32 %v771, 1.0
        %v788 = vpack.c.bf16 %v773, %v772
        %v789 = vpack.c.bf16 %v775, %v774
        %v790 = vpack.c.bf16 %v777, %v776
        %v791 = vpack.c.bf16 %v779, %v778
        %v792 = vpack.c.bf16 %v781, %v780
        %v793 = vpack.c.bf16 %v783, %v782
        %v794 = vpack.c.bf16 %v785, %v784
        %v795 = vpack.c.bf16 %v787, %v786
        %v796 = vld [vmem:[%s4] sm:$0xf]
        %v797 = vld [vmem:[%s4 + $0x4] sm:$0xf]
        %v798 = vld [vmem:[%s4 + $0x8] sm:$0xf]
        %v799 = vld [vmem:[%s4 + $0xc] sm:$0xf]
        %v800 = vld [vmem:[%s4 + $0x10] sm:$0xf]
        %v801 = vld [vmem:[%s4 + $0x14] sm:$0xf]
        %v802 = vld [vmem:[%s4 + $0x18] sm:$0xf]
        %v803 = vld [vmem:[%s4 + $0x1c] sm:$0xf]
        %v804 = vld [vmem:[%s4 + $0x20] sm:$0xf]
        %v805 = vld [vmem:[%s4 + $0x24] sm:$0xf]
        %v806 = vld [vmem:[%s4 + $0x28] sm:$0xf]
        %v807 = vld [vmem:[%s4 + $0x2c] sm:$0xf]
        %v808 = vld [vmem:[%s4 + $0x30] sm:$0xf]
        %v809 = vld [vmem:[%s4 + $0x34] sm:$0xf]
        %v810 = vld [vmem:[%s4 + $0x38] sm:$0xf]
        %v811 = vld [vmem:[%s4 + $0x3c] sm:$0xf]
        %v812 = vld [vmem:[%s5] sm:$0x1]
        %v814 = vlaneseq
        %v815 = vshrl.u32 %v814, 7
        %v816 = vsub.s32 0, %v815
        %v817 = vrot.slane %v812, %v816
        %v835 = vunpack.c.l.b16 %v796
        %v836 = vunpack.c.l.b16 %v797
        %v837 = vunpack.c.l.b16 %v798
        %v838 = vunpack.c.l.b16 %v799
        %v839 = vunpack.c.l.b16 %v800
        %v840 = vunpack.c.l.b16 %v801
        %v841 = vunpack.c.l.b16 %v802
        %v842 = vunpack.c.l.b16 %v803
        %v843 = vunpack.c.l.b16 %v804
        %v844 = vunpack.c.l.b16 %v805
        %v845 = vunpack.c.l.b16 %v806
        %v846 = vunpack.c.l.b16 %v807
        %v847 = vunpack.c.l.b16 %v808
        %v848 = vunpack.c.l.b16 %v809
        %v849 = vunpack.c.l.b16 %v810
        %v850 = vunpack.c.l.b16 %v811
        %v851 = vpack.c.b16 %v836, %v835
        %v852 = vpack.c.b16 %v838, %v837
        %v853 = vpack.c.b16 %v840, %v839
        %v854 = vpack.c.b16 %v842, %v841
        %v855 = vpack.c.b16 %v844, %v843
        %v856 = vpack.c.b16 %v846, %v845
        %v857 = vpack.c.b16 %v848, %v847
        %v858 = vpack.c.b16 %v850, %v849
        %867 = vmatprep.subr.bf16.mxu0 0
        %868 = vmatpush1.bf16.msra.mxu0 %v851
        %869 = vmatprep.subr.bf16.mxu0 0
        %870 = vmatpush1.bf16.msra.mxu0 %v852
        %871 = vmatprep.subr.bf16.mxu0 0
        %872 = vmatpush1.bf16.msra.mxu0 %v853
        %873 = vmatprep.subr.bf16.mxu0 0
        %874 = vmatpush1.bf16.msra.mxu0 %v854
        %875 = vmatprep.subr.bf16.mxu0 0
        %876 = vmatpush1.bf16.msra.mxu0 %v855
        %877 = vmatprep.subr.bf16.mxu0 0
        %878 = vmatpush1.bf16.msra.mxu0 %v856
        %879 = vmatprep.subr.bf16.mxu0 0
        %880 = vmatpush1.bf16.msra.mxu0 %v857
        %881 = vmatprep.subr.bf16.mxu0 0
        %882 = vmatpush1.bf16.msra.mxu0 %v858
        %883 = vmatprep.subr.bf16.mxu0 0
        %884 = vmatpush1.bf16.msra.mxu0 0
        %885 = vmatprep.subr.bf16.mxu0 0
        %886 = vmatpush1.bf16.msra.mxu0 0
        %887 = vmatprep.subr.bf16.mxu0 0
        %888 = vmatpush1.bf16.msra.mxu0 0
        %889 = vmatprep.subr.bf16.mxu0 0
        %890 = vmatpush1.bf16.msra.mxu0 0
        %891 = vmatprep.subr.bf16.mxu0 0
        %892 = vmatpush1.bf16.msra.mxu0 0
        %893 = vmatprep.subr.bf16.mxu0 0
        %894 = vmatpush1.bf16.msra.mxu0 0
        %895 = vmatprep.subr.bf16.mxu0 0
        %896 = vmatpush1.bf16.msra.mxu0 0
        %897 = vmatprep.subr.bf16.mxu0 0
        %898 = vmatpush1.bf16.msra.mxu0 0
        %899 = vmatprep.mubr.bf16.mxu0 0
        %900 = vmatmul.mubr.bf16.gmra.mrb[0].mxu0 %v788
        %v901 = vpop.f32.mrb[0].mxu0
        %v902 = vadd.f32 %v817, %v901
        %v903 = vpop.f32.mrb[0].mxu0
        %v904 = vpop.f32.mrb[0].mxu0
        %v905 = vadd.f32 %v817, %v904
        %v906 = vpop.f32.mrb[0].mxu0
        %907 = vmatprep.mubr.bf16.mxu0 0
        %908 = vmatmul.mubr.bf16.gmra.mrb[0].mxu0 %v789
        %v909 = vpop.f32.mrb[0].mxu0
        %v910 = vadd.f32 %v817, %v909
        %v911 = vpop.f32.mrb[0].mxu0
        %v912 = vpop.f32.mrb[0].mxu0
        %v913 = vadd.f32 %v817, %v912
        %v914 = vpop.f32.mrb[0].mxu0
        %915 = vmatprep.mubr.bf16.mxu0 0
        %916 = vmatmul.mubr.bf16.gmra.mrb[0].mxu0 %v790
        %v917 = vpop.f32.mrb[0].mxu0
        %v918 = vadd.f32 %v817, %v917
        %v919 = vpop.f32.mrb[0].mxu0
        %v920 = vpop.f32.mrb[0].mxu0
        %v921 = vadd.f32 %v817, %v920
        %v922 = vpop.f32.mrb[0].mxu0
        %923 = vmatprep.mubr.bf16.mxu0 0
        %924 = vmatmul.mubr.bf16.gmra.mrb[0].mxu0 %v791
        %v925 = vpop.f32.mrb[0].mxu0
        %v926 = vadd.f32 %v817, %v925
        %v927 = vpop.f32.mrb[0].mxu0
        %v928 = vpop.f32.mrb[0].mxu0
        %v929 = vadd.f32 %v817, %v928
        %v930 = vpop.f32.mrb[0].mxu0
        %931 = vmatprep.mubr.bf16.mxu0 0
        %932 = vmatmul.mubr.bf16.gmra.mrb[0].mxu0 %v792
        %v933 = vpop.f32.mrb[0].mxu0
        %v934 = vadd.f32 %v817, %v933
        %v935 = vpop.f32.mrb[0].mxu0
        %v936 = vpop.f32.mrb[0].mxu0
        %v937 = vadd.f32 %v817, %v936
        %v938 = vpop.f32.mrb[0].mxu0
        %939 = vmatprep.mubr.bf16.mxu0 0
        %940 = vmatmul.mubr.bf16.gmra.mrb[0].mxu0 %v793
        %v941 = vpop.f32.mrb[0].mxu0
        %v942 = vadd.f32 %v817, %v941
        %v943 = vpop.f32.mrb[0].mxu0
        %v944 = vpop.f32.mrb[0].mxu0
        %v945 = vadd.f32 %v817, %v944
        %v946 = vpop.f32.mrb[0].mxu0
        %947 = vmatprep.mubr.bf16.mxu0 0
        %948 = vmatmul.mubr.bf16.gmra.mrb[0].mxu0 %v794
        %v949 = vpop.f32.mrb[0].mxu0
        %v950 = vadd.f32 %v817, %v949
        %v951 = vpop.f32.mrb[0].mxu0
        %v952 = vpop.f32.mrb[0].mxu0
        %v953 = vadd.f32 %v817, %v952
        %v954 = vpop.f32.mrb[0].mxu0
        %955 = vmatprep.mubr.bf16.mxu0 0
        %956 = vmatmul.mubr.bf16.gmra.mrb[0].mxu0 %v795
        %v957 = vpop.f32.mrb[0].mxu0
        %v958 = vadd.f32 %v817, %v957
        %v959 = vpop.f32.mrb[0].mxu0
        %v960 = vpop.f32.mrb[0].mxu0
        %v961 = vadd.f32 %v817, %v960
        %v962 = vpop.f32.mrb[0].mxu0
        %963 = vdwg.mxu0
        %v964 = vmax.f32 %v902, -1.0
        %v965 = vmax.f32 %v905, -1.0
        %v966 = vmax.f32 %v910, -1.0
        %v967 = vmax.f32 %v913, -1.0
        %v968 = vmax.f32 %v918, -1.0
        %v969 = vmax.f32 %v921, -1.0
        %v970 = vmax.f32 %v926, -1.0
        %v971 = vmax.f32 %v929, -1.0
        %v972 = vmax.f32 %v934, -1.0
        %v973 = vmax.f32 %v937, -1.0
        %v974 = vmax.f32 %v942, -1.0
        %v975 = vmax.f32 %v945, -1.0
        %v976 = vmax.f32 %v950, -1.0
        %v977 = vmax.f32 %v953, -1.0
        %v978 = vmax.f32 %v958, -1.0
        %v979 = vmax.f32 %v961, -1.0
        %v980 = vmin.f32 %v964, 1.0
        %v981 = vmin.f32 %v965, 1.0
        %v982 = vmin.f32 %v966, 1.0
        %v983 = vmin.f32 %v967, 1.0
        %v984 = vmin.f32 %v968, 1.0
        %v985 = vmin.f32 %v969, 1.0
        %v986 = vmin.f32 %v970, 1.0
        %v987 = vmin.f32 %v971, 1.0
        %v988 = vmin.f32 %v972, 1.0
        %v989 = vmin.f32 %v973, 1.0
        %v990 = vmin.f32 %v974, 1.0
        %v991 = vmin.f32 %v975, 1.0
        %v992 = vmin.f32 %v976, 1.0
        %v993 = vmin.f32 %v977, 1.0
        %v994 = vmin.f32 %v978, 1.0
        %v995 = vmin.f32 %v979, 1.0
        %v996 = vpack.c.bf16 %v981, %v980
        %v997 = vpack.c.bf16 %v983, %v982
        %v998 = vpack.c.bf16 %v985, %v984
        %v999 = vpack.c.bf16 %v987, %v986
        %v1000 = vpack.c.bf16 %v989, %v988
        %v1001 = vpack.c.bf16 %v991, %v990
        %v1002 = vpack.c.bf16 %v993, %v992
        %v1003 = vpack.c.bf16 %v995, %v994
        %v1004 = vld [vmem:[%s6] sm:$0xf]
        %v1005 = vld [vmem:[%s6 + $0x4] sm:$0xf]
        %v1006 = vld [vmem:[%s6 + $0x8] sm:$0xf]
        %v1007 = vld [vmem:[%s6 + $0xc] sm:$0xf]
        %v1008 = vld [vmem:[%s6 + $0x10] sm:$0xf]
        %v1009 = vld [vmem:[%s6 + $0x14] sm:$0xf]
        %v1010 = vld [vmem:[%s6 + $0x18] sm:$0xf]
        %v1011 = vld [vmem:[%s6 + $0x1c] sm:$0xf]
        %v1012 = vld [vmem:[%s7] sm:$0x1]
        %v1014 = vlaneseq
        %v1015 = vshrl.u32 %v1014, 7
        %v1016 = vsub.s32 0, %v1015
        %v1017 = vrot.slane %v1012, %v1016
        %v1027 = vunpack.c.l.b16 %v1004
        %v1028 = vunpack.c.l.b16 %v1005
        %v1029 = vunpack.c.l.b16 %v1006
        %v1030 = vunpack.c.l.b16 %v1007
        %v1031 = vunpack.c.l.b16 %v1008
        %v1032 = vunpack.c.l.b16 %v1009
        %v1033 = vunpack.c.l.b16 %v1010
        %v1034 = vunpack.c.l.b16 %v1011
        %v1035 = vpack.c.b16 %v1028, %v1027
        %v1036 = vpack.c.b16 %v1030, %v1029
        %v1037 = vpack.c.b16 %v1032, %v1031
        %v1038 = vpack.c.b16 %v1034, %v1033
        %vm1043 = vcmask 523264
        %v1045 = vsel %vm1043, %v996, 0
        %v1048 = vsel %vm1043, %v997, 0
        %v1051 = vsel %vm1043, %v998, 0
        %v1054 = vsel %vm1043, %v999, 0
        %v1057 = vsel %vm1043, %v1000, 0
        %v1060 = vsel %vm1043, %v1001, 0
        %v1063 = vsel %vm1043, %v1002, 0
        %v1066 = vsel %vm1043, %v1003, 0
        %1068 = vmatprep.subr.bf16.mxu0 0
        %1069 = vmatpush1.bf16.msra.mxu0 %v1035
        %1070 = vmatprep.subr.bf16.mxu0 0
        %1071 = vmatpush1.bf16.msra.mxu0 %v1036
        %1072 = vmatprep.subr.bf16.mxu0 0
        %1073 = vmatpush1.bf16.msra.mxu0 %v1037
        %1074 = vmatprep.subr.bf16.mxu0 0
        %1075 = vmatpush1.bf16.msra.mxu0 %v1038
        %1076 = vmatprep.subr.bf16.mxu0 0
        %1077 = vmatpush1.bf16.msra.mxu0 0
        %1078 = vmatprep.subr.bf16.mxu0 0
        %1079 = vmatpush1.bf16.msra.mxu0 0
        %1080 = vmatprep.subr.bf16.mxu0 0
        %1081 = vmatpush1.bf16.msra.mxu0 0
        %1082 = vmatprep.subr.bf16.mxu0 0
        %1083 = vmatpush1.bf16.msra.mxu0 0
        %1084 = vmatprep.subr.bf16.mxu0 0
        %1085 = vmatpush1.bf16.msra.mxu0 0
        %1086 = vmatprep.subr.bf16.mxu0 0
        %1087 = vmatpush1.bf16.msra.mxu0 0
        %1088 = vmatprep.subr.bf16.mxu0 0
        %1089 = vmatpush1.bf16.msra.mxu0 0
        %1090 = vmatprep.subr.bf16.mxu0 0
        %1091 = vmatpush1.bf16.msra.mxu0 0
        %1092 = vmatprep.subr.bf16.mxu0 0
        %1093 = vmatpush1.bf16.msra.mxu0 0
        %1094 = vmatprep.subr.bf16.mxu0 0
        %1095 = vmatpush1.bf16.msra.mxu0 0
        %1096 = vmatprep.subr.bf16.mxu0 0
        %1097 = vmatpush1.bf16.msra.mxu0 0
        %1098 = vmatprep.subr.bf16.mxu0 0
        %1099 = vmatpush1.bf16.msra.mxu0 0
        %1100 = vmatprep.mubr.bf16.mxu0 0
        %1101 = vmatmul.mubr.bf16.gmra.mrb[0].mxu0 %v1045
        %v1102 = vpop.f32.mrb[0].mxu0
        %v1103 = vadd.f32 %v1017, %v1102
        %v1104 = vpop.f32.mrb[0].mxu0
        %v1105 = vpop.f32.mrb[0].mxu0
        %v1106 = vadd.f32 %v1017, %v1105
        %v1107 = vpop.f32.mrb[0].mxu0
        %1108 = vmatprep.mubr.bf16.mxu0 0
        %1109 = vmatmul.mubr.bf16.gmra.mrb[0].mxu0 %v1048
        %v1110 = vpop.f32.mrb[0].mxu0
        %v1111 = vadd.f32 %v1017, %v1110
        %v1112 = vpop.f32.mrb[0].mxu0
        %v1113 = vpop.f32.mrb[0].mxu0
        %v1114 = vadd.f32 %v1017, %v1113
        %v1115 = vpop.f32.mrb[0].mxu0
        %1116 = vmatprep.mubr.bf16.mxu0 0
        %1117 = vmatmul.mubr.bf16.gmra.mrb[0].mxu0 %v1051
        %v1118 = vpop.f32.mrb[0].mxu0
        %v1119 = vadd.f32 %v1017, %v1118
        %v1120 = vpop.f32.mrb[0].mxu0
        %v1121 = vpop.f32.mrb[0].mxu0
        %v1122 = vadd.f32 %v1017, %v1121
        %v1123 = vpop.f32.mrb[0].mxu0
        %1124 = vmatprep.mubr.bf16.mxu0 0
        %1125 = vmatmul.mubr.bf16.gmra.mrb[0].mxu0 %v1054
        %v1126 = vpop.f32.mrb[0].mxu0
        %v1127 = vadd.f32 %v1017, %v1126
        %v1128 = vpop.f32.mrb[0].mxu0
        %v1129 = vpop.f32.mrb[0].mxu0
        %v1130 = vadd.f32 %v1017, %v1129
        %v1131 = vpop.f32.mrb[0].mxu0
        %1132 = vmatprep.mubr.bf16.mxu0 0
        %1133 = vmatmul.mubr.bf16.gmra.mrb[0].mxu0 %v1057
        %v1134 = vpop.f32.mrb[0].mxu0
        %v1135 = vadd.f32 %v1017, %v1134
        %v1136 = vpop.f32.mrb[0].mxu0
        %v1137 = vpop.f32.mrb[0].mxu0
        %v1138 = vadd.f32 %v1017, %v1137
        %v1139 = vpop.f32.mrb[0].mxu0
        %1140 = vmatprep.mubr.bf16.mxu0 0
        %1141 = vmatmul.mubr.bf16.gmra.mrb[0].mxu0 %v1060
        %v1142 = vpop.f32.mrb[0].mxu0
        %v1143 = vadd.f32 %v1017, %v1142
        %v1144 = vpop.f32.mrb[0].mxu0
        %v1145 = vpop.f32.mrb[0].mxu0
        %v1146 = vadd.f32 %v1017, %v1145
        %v1147 = vpop.f32.mrb[0].mxu0
        %1148 = vmatprep.mubr.bf16.mxu0 0
        %1149 = vmatmul.mubr.bf16.gmra.mrb[0].mxu0 %v1063
        %v1150 = vpop.f32.mrb[0].mxu0
        %v1151 = vadd.f32 %v1017, %v1150
        %v1152 = vpop.f32.mrb[0].mxu0
        %v1153 = vpop.f32.mrb[0].mxu0
        %v1154 = vadd.f32 %v1017, %v1153
        %v1155 = vpop.f32.mrb[0].mxu0
        %1156 = vmatprep.mubr.bf16.mxu0 0
        %1157 = vmatmul.mubr.bf16.gmra.mrb[0].mxu0 %v1066
        %v1158 = vpop.f32.mrb[0].mxu0
        %v1159 = vadd.f32 %v1017, %v1158
        %v1160 = vpop.f32.mrb[0].mxu0
        %v1161 = vpop.f32.mrb[0].mxu0
        %v1162 = vadd.f32 %v1017, %v1161
        %v1163 = vpop.f32.mrb[0].mxu0
        %1164 = vdwg.mxu0
        %v1165 = vmax.f32 %v1103, -1.0
        %v1166 = vmax.f32 %v1106, -1.0
        %v1167 = vmax.f32 %v1111, -1.0
        %v1168 = vmax.f32 %v1114, -1.0
        %v1169 = vmax.f32 %v1119, -1.0
        %v1170 = vmax.f32 %v1122, -1.0
        %v1171 = vmax.f32 %v1127, -1.0
        %v1172 = vmax.f32 %v1130, -1.0
        %v1173 = vmax.f32 %v1135, -1.0
        %v1174 = vmax.f32 %v1138, -1.0
        %v1175 = vmax.f32 %v1143, -1.0
        %v1176 = vmax.f32 %v1146, -1.0
        %v1177 = vmax.f32 %v1151, -1.0
        %v1178 = vmax.f32 %v1154, -1.0
        %v1179 = vmax.f32 %v1159, -1.0
        %v1180 = vmax.f32 %v1162, -1.0
        %v1181 = vmin.f32 %v1165, 1.0
        %v1182 = vmin.f32 %v1166, 1.0
        %v1183 = vmin.f32 %v1167, 1.0
        %v1184 = vmin.f32 %v1168, 1.0
        %v1185 = vmin.f32 %v1169, 1.0
        %v1186 = vmin.f32 %v1170, 1.0
        %v1187 = vmin.f32 %v1171, 1.0
        %v1188 = vmin.f32 %v1172, 1.0
        %v1189 = vmin.f32 %v1173, 1.0
        %v1190 = vmin.f32 %v1174, 1.0
        %v1191 = vmin.f32 %v1175, 1.0
        %v1192 = vmin.f32 %v1176, 1.0
        %v1193 = vmin.f32 %v1177, 1.0
        %v1194 = vmin.f32 %v1178, 1.0
        %v1195 = vmin.f32 %v1179, 1.0
        %v1196 = vmin.f32 %v1180, 1.0
        %v1197 = vpack.c.bf16 %v1182, %v1181
        %v1198 = vpack.c.bf16 %v1184, %v1183
        %v1199 = vpack.c.bf16 %v1186, %v1185
        %v1200 = vpack.c.bf16 %v1188, %v1187
        %v1201 = vpack.c.bf16 %v1190, %v1189
        %v1202 = vpack.c.bf16 %v1192, %v1191
        %v1203 = vpack.c.bf16 %v1194, %v1193
        %v1204 = vpack.c.bf16 %v1196, %v1195
        %v1205 = vld [vmem:[%s8] sm:$0xf]
        %v1206 = vld [vmem:[%s8 + $0x4] sm:$0xf]
        %v1207 = vld [vmem:[%s8 + $0x8] sm:$0xf]
        %v1208 = vld [vmem:[%s8 + $0xc] sm:$0xf]
        %v1209 = vld [vmem:[%s9] sm:$0x1]
        %v1211 = vlaneseq
        %v1212 = vshrl.u32 %v1211, 7
        %v1213 = vsub.s32 0, %v1212
        %v1214 = vrot.slane %v1209, %v1213
        %v1220 = vunpack.c.l.b16 %v1205
        %v1221 = vunpack.c.l.b16 %v1206
        %v1222 = vunpack.c.l.b16 %v1207
        %v1223 = vunpack.c.l.b16 %v1208
        %v1224 = vpack.c.b16 %v1221, %v1220
        %v1225 = vpack.c.b16 %v1223, %v1222
        %vm1228 = vcmask 261120
        %v1230 = vsel %vm1228, %v1197, 0
        %v1233 = vsel %vm1228, %v1198, 0
        %v1236 = vsel %vm1228, %v1199, 0
        %v1239 = vsel %vm1228, %v1200, 0
        %v1242 = vsel %vm1228, %v1201, 0
        %v1245 = vsel %vm1228, %v1202, 0
        %v1248 = vsel %vm1228, %v1203, 0
        %v1251 = vsel %vm1228, %v1204, 0
        %1253 = vmatprep.subr.bf16.mxu0 0
        %1254 = vmatpush1.bf16.msra.mxu0 %v1224
        %1255 = vmatprep.subr.bf16.mxu0 0
        %1256 = vmatpush1.bf16.msra.mxu0 %v1225
        %1257 = vmatprep.subr.bf16.mxu0 0
        %1258 = vmatpush1.bf16.msra.mxu0 0
        %1259 = vmatprep.subr.bf16.mxu0 0
        %1260 = vmatpush1.bf16.msra.mxu0 0
        %1261 = vmatprep.subr.bf16.mxu0 0
        %1262 = vmatpush1.bf16.msra.mxu0 0
        %1263 = vmatprep.subr.bf16.mxu0 0
        %1264 = vmatpush1.bf16.msra.mxu0 0
        %1265 = vmatprep.subr.bf16.mxu0 0
        %1266 = vmatpush1.bf16.msra.mxu0 0
        %1267 = vmatprep.subr.bf16.mxu0 0
        %1268 = vmatpush1.bf16.msra.mxu0 0
        %1269 = vmatprep.subr.bf16.mxu0 0
        %1270 = vmatpush1.bf16.msra.mxu0 0
        %1271 = vmatprep.subr.bf16.mxu0 0
        %1272 = vmatpush1.bf16.msra.mxu0 0
        %1273 = vmatprep.subr.bf16.mxu0 0
        %1274 = vmatpush1.bf16.msra.mxu0 0
        %1275 = vmatprep.subr.bf16.mxu0 0
        %1276 = vmatpush1.bf16.msra.mxu0 0
        %1277 = vmatprep.subr.bf16.mxu0 0
        %1278 = vmatpush1.bf16.msra.mxu0 0
        %1279 = vmatprep.subr.bf16.mxu0 0
        %1280 = vmatpush1.bf16.msra.mxu0 0
        %1281 = vmatprep.subr.bf16.mxu0 0
        %1282 = vmatpush1.bf16.msra.mxu0 0
        %1283 = vmatprep.subr.bf16.mxu0 0
        %1284 = vmatpush1.bf16.msra.mxu0 0
        %1285 = vmatprep.mubr.bf16.mxu0 0
        %1286 = vmatmul.mubr.bf16.gmra.mrb[0].mxu0 %v1230
        %v1287 = vpop.f32.mrb[0].mxu0
        %v1288 = vadd.f32 %v1214, %v1287
        %v1289 = vpop.f32.mrb[0].mxu0
        %v1290 = vpop.f32.mrb[0].mxu0
        %v1291 = vadd.f32 %v1214, %v1290
        %v1292 = vpop.f32.mrb[0].mxu0
        %1293 = vmatprep.mubr.bf16.mxu0 0
        %1294 = vmatmul.mubr.bf16.gmra.mrb[0].mxu0 %v1233
        %v1295 = vpop.f32.mrb[0].mxu0
        %v1296 = vadd.f32 %v1214, %v1295
        %v1297 = vpop.f32.mrb[0].mxu0
        %v1298 = vpop.f32.mrb[0].mxu0
        %v1299 = vadd.f32 %v1214, %v1298
        %v1300 = vpop.f32.mrb[0].mxu0
        %1301 = vmatprep.mubr.bf16.mxu0 0
        %1302 = vmatmul.mubr.bf16.gmra.mrb[0].mxu0 %v1236
        %v1303 = vpop.f32.mrb[0].mxu0
        %v1304 = vadd.f32 %v1214, %v1303
        %v1305 = vpop.f32.mrb[0].mxu0
        %v1306 = vpop.f32.mrb[0].mxu0
        %v1307 = vadd.f32 %v1214, %v1306
        %v1308 = vpop.f32.mrb[0].mxu0
        %1309 = vmatprep.mubr.bf16.mxu0 0
        %1310 = vmatmul.mubr.bf16.gmra.mrb[0].mxu0 %v1239
        %v1311 = vpop.f32.mrb[0].mxu0
        %v1312 = vadd.f32 %v1214, %v1311
        %v1313 = vpop.f32.mrb[0].mxu0
        %v1314 = vpop.f32.mrb[0].mxu0
        %v1315 = vadd.f32 %v1214, %v1314
        %v1316 = vpop.f32.mrb[0].mxu0
        %1317 = vmatprep.mubr.bf16.mxu0 0
        %1318 = vmatmul.mubr.bf16.gmra.mrb[0].mxu0 %v1242
        %v1319 = vpop.f32.mrb[0].mxu0
        %v1320 = vadd.f32 %v1214, %v1319
        %v1321 = vpop.f32.mrb[0].mxu0
        %v1322 = vpop.f32.mrb[0].mxu0
        %v1323 = vadd.f32 %v1214, %v1322
        %v1324 = vpop.f32.mrb[0].mxu0
        %1325 = vmatprep.mubr.bf16.mxu0 0
        %1326 = vmatmul.mubr.bf16.gmra.mrb[0].mxu0 %v1245
        %v1327 = vpop.f32.mrb[0].mxu0
        %v1328 = vadd.f32 %v1214, %v1327
        %v1329 = vpop.f32.mrb[0].mxu0
        %v1330 = vpop.f32.mrb[0].mxu0
        %v1331 = vadd.f32 %v1214, %v1330
        %v1332 = vpop.f32.mrb[0].mxu0
        %1333 = vmatprep.mubr.bf16.mxu0 0
        %1334 = vmatmul.mubr.bf16.gmra.mrb[0].mxu0 %v1248
        %v1335 = vpop.f32.mrb[0].mxu0
        %v1336 = vadd.f32 %v1214, %v1335
        %v1337 = vpop.f32.mrb[0].mxu0
        %v1338 = vpop.f32.mrb[0].mxu0
        %v1339 = vadd.f32 %v1214, %v1338
        %v1340 = vpop.f32.mrb[0].mxu0
        %1341 = vmatprep.mubr.bf16.mxu0 0
        %1342 = vmatmul.mubr.bf16.gmra.mrb[0].mxu0 %v1251
        %v1343 = vpop.f32.mrb[0].mxu0
        %v1344 = vadd.f32 %v1214, %v1343
        %v1345 = vpop.f32.mrb[0].mxu0
        %v1346 = vpop.f32.mrb[0].mxu0
        %v1347 = vadd.f32 %v1214, %v1346
        %v1348 = vpop.f32.mrb[0].mxu0
        %1349 = vdwg.mxu0
        %v1350 = vmax.f32 %v1288, -1.0
        %v1351 = vmax.f32 %v1291, -1.0
        %v1352 = vmax.f32 %v1296, -1.0
        %v1353 = vmax.f32 %v1299, -1.0
        %v1354 = vmax.f32 %v1304, -1.0
        %v1355 = vmax.f32 %v1307, -1.0
        %v1356 = vmax.f32 %v1312, -1.0
        %v1357 = vmax.f32 %v1315, -1.0
        %v1358 = vmax.f32 %v1320, -1.0
        %v1359 = vmax.f32 %v1323, -1.0
        %v1360 = vmax.f32 %v1328, -1.0
        %v1361 = vmax.f32 %v1331, -1.0
        %v1362 = vmax.f32 %v1336, -1.0
        %v1363 = vmax.f32 %v1339, -1.0
        %v1364 = vmax.f32 %v1344, -1.0
        %v1365 = vmax.f32 %v1347, -1.0
        %v1366 = vmin.f32 %v1350, 1.0
        %v1367 = vmin.f32 %v1351, 1.0
        %v1368 = vmin.f32 %v1352, 1.0
        %v1369 = vmin.f32 %v1353, 1.0
        %v1370 = vmin.f32 %v1354, 1.0
        %v1371 = vmin.f32 %v1355, 1.0
        %v1372 = vmin.f32 %v1356, 1.0
        %v1373 = vmin.f32 %v1357, 1.0
        %v1374 = vmin.f32 %v1358, 1.0
        %v1375 = vmin.f32 %v1359, 1.0
        %v1376 = vmin.f32 %v1360, 1.0
        %v1377 = vmin.f32 %v1361, 1.0
        %v1378 = vmin.f32 %v1362, 1.0
        %v1379 = vmin.f32 %v1363, 1.0
        %v1380 = vmin.f32 %v1364, 1.0
        %v1381 = vmin.f32 %v1365, 1.0
        %v1382 = vld [vmem:[%s10] sm:$0x1]
        %v1383 = vpack.c.bf16 %v1367, %v1366
        %v1384 = vpack.c.bf16 %v1369, %v1368
        %v1385 = vpack.c.bf16 %v1371, %v1370
        %v1386 = vpack.c.bf16 %v1373, %v1372
        %v1387 = vpack.c.bf16 %v1375, %v1374
        %v1388 = vpack.c.bf16 %v1377, %v1376
        %v1389 = vpack.c.bf16 %v1379, %v1378
        %v1390 = vpack.c.bf16 %v1381, %v1380
        %v1391 = vld [vmem:[#allocation2] sm:$0x1]
        %1393 = vset.pattern.permute.xlu0 0
        %1394 = vperm.xlu0 %1393, %v1391
        %v1395 = vpop.permute.xlu0 %1394
        %v1397 = vlaneseq
        %v1398 = vshrl.u32 %v1397, 7
        %v1399 = vsub.s32 0, %v1398
        %v1400 = vrot.slane %v1395, %v1399
        %vm1401 = vcmask 130048
        %v1403 = vsel %vm1401, %v1382, 0
        %v1406 = vsel %vm1401, %v1383, 0
        %v1409 = vsel %vm1401, %v1384, 0
        %v1412 = vsel %vm1401, %v1385, 0
        %v1415 = vsel %vm1401, %v1386, 0
        %v1418 = vsel %vm1401, %v1387, 0
        %v1421 = vsel %vm1401, %v1388, 0
        %v1424 = vsel %vm1401, %v1389, 0
        %v1427 = vsel %vm1401, %v1390, 0
        %1429 = vmatprep.subr.bf16.mxu0 0
        %1430 = vmatpush1.bf16.xpose.msra.mxu0 %v1406
        %1431 = vmatprep.subr.bf16.mxu0 0
        %1432 = vmatpush1.bf16.xpose.msra.mxu0 %v1409
        %1433 = vmatprep.subr.bf16.mxu0 0
        %1434 = vmatpush1.bf16.xpose.msra.mxu0 %v1412
        %1435 = vmatprep.subr.bf16.mxu0 0
        %1436 = vmatpush1.bf16.xpose.msra.mxu0 %v1415
        %1437 = vmatprep.subr.bf16.mxu0 0
        %1438 = vmatpush1.bf16.xpose.msra.mxu0 %v1418
        %1439 = vmatprep.subr.bf16.mxu0 0
        %1440 = vmatpush1.bf16.xpose.msra.mxu0 %v1421
        %1441 = vmatprep.subr.bf16.mxu0 0
        %1442 = vmatpush1.bf16.xpose.msra.mxu0 %v1424
        %1443 = vmatprep.subr.bf16.mxu0 0
        %1444 = vmatpush1.bf16.xpose.msra.mxu0 %v1427
        %1445 = vmatprep.subr.bf16.mxu0 0
        %1446 = vmatpush1.bf16.xpose.msra.mxu0 0
        %1447 = vmatprep.subr.bf16.mxu0 0
        %1448 = vmatpush1.bf16.xpose.msra.mxu0 0
        %1449 = vmatprep.subr.bf16.mxu0 0
        %1450 = vmatpush1.bf16.xpose.msra.mxu0 0
        %1451 = vmatprep.subr.bf16.mxu0 0
        %1452 = vmatpush1.bf16.xpose.msra.mxu0 0
        %1453 = vmatprep.subr.bf16.mxu0 0
        %1454 = vmatpush1.bf16.xpose.msra.mxu0 0
        %1455 = vmatprep.subr.bf16.mxu0 0
        %1456 = vmatpush1.bf16.xpose.msra.mxu0 0
        %1457 = vmatprep.subr.bf16.mxu0 0
        %1458 = vmatpush1.bf16.xpose.msra.mxu0 0
        %1459 = vmatprep.subr.bf16.mxu0 0
        %1460 = vmatpush1.bf16.xpose.msra.mxu0 0
        %1461 = vmatprep.mubr.bf16.mxu0 0
        %1462 = vmatmul.mubr.bf16.gmra.mrb[0].mxu0 %v1403
        %v1463 = vpop.f32.mrb[0].mxu0
        %v1464 = vadd.f32 %v1400, %v1463
        %v1465 = vpop.f32.mrb[0].mxu0
        %v1466 = vpop.f32.mrb[0].mxu0
        %v1467 = vpop.f32.mrb[0].mxu0
        %1468 = vdwg.mxu0
        %1469 = vst [vmem:[%s472] sm:$0x1] %v1464
        %s1470 = sand.u32 %s304, 1
        %s1471 = scalar_lea.sflag [#allocation5], %s1470
        %s1472 = sand.u32 %s304, 1
        %s1473 = scalar_lea.vmem [#allocation8], %s1472
        // Predicated region
        $region77: #{tpu_custom_call.1} parent=67 // pred_check
          %p1474 = pneg %p314
        $region78: #{tpu_custom_call.1} parent=67 // pred_check_branch
          %1476 = sbr.rel (%p1474) target = $region80
        $region79: #{tpu_custom_call.1} parent=67 // pred_region
          %s1478 = ssub.s32 16, 16
          %1479 = vsyncadd %s1471, %s1478
          %s1480 = smul.addr %s34, 16
          %s1481 = scalar_lea.hbm %s12, %s1480
          %s1483 = sshll.u32 %s1473, 4
          %s1484 = int_to_ptr.vmem [resolvable:$true] %s1483
          %1486 = dma.vmem_to_hbm [thread:$0]  %s1484, 16, %s1481, %s1471
        $region80: #{tpu_custom_call.1} parent=67 // pred_fallthru
          _
      $region68: #{tpu_custom_call.1} parent=5 // pred_fallthru
        _
      %p1487 = scmp.le.s32.totalorder 2, %s29
      // Predicated region
      $region81: #{tpu_custom_call.1} parent=5 // pred_check
        %p1488 = pneg %p1487
      $region82: #{tpu_custom_call.1} parent=5 // pred_check_branch
        %1490 = sbr.rel (%p1488) target = $region84
      $region83: #{tpu_custom_call.1} parent=5 // pred_region
        %s1491 = ssub.s32 %s29, 2
        // Predicated region
        $region85: #{tpu_custom_call.1} parent=83 // pred_check
          %p1492 = pneg %p320
        $region86: #{tpu_custom_call.1} parent=83 // pred_check_branch
          %1494 = sbr.rel (%p1492) target = $region88
        $region87: #{tpu_custom_call.1} parent=83 // pred_region
          %s1495 = sand.u32 %s305, 1
          %s1496 = scalar_lea.sflag [#allocation5], %s1495
          %s1497 = sand.u32 %s305, 1
          %s1498 = scalar_lea.vmem [#allocation8], %s1497
          %1499 = dma.done %s1496, 16
        $region88: #{tpu_custom_call.1} parent=83 // pred_fallthru
          _
      $region84: #{tpu_custom_call.1} parent=5 // pred_fallthru
        _
    $region6: #{tpu_custom_call.1} parent=1 // loop_footer
      %s33 = sadd.s32 1, %s29
    $region7: #{tpu_custom_call.1} parent=1 // loop_footer_branch
      %28 = sbr.rel target = $region3
    $region8: #{tpu_custom_call.1} parent=1 // loop_exit
      _
    %1500 = vsyncpa [#allocation4], 1
    %s1501 = scalar_lea.sflag [#allocation4], 1
    %1502 = vsyncpa %s1501, 1
    %1503 = vsyncpa [#allocation7], 1
    %s1504 = scalar_lea.sflag [#allocation7], 1
    %1505 = vsyncpa %s1504, 1
    %1506 = vsyncpa [#allocation5], 1
    %s1507 = scalar_lea.sflag [#allocation5], 1
    %1508 = vsyncpa %s1507, 1

</llo_original>
